<compile_context>
chip_gen: v7x
topology: tpu7x:2x2x1
jax: 0.10.0
libtpu: 0.0.40
codegen_flags: <defaults>
</compile_context>

<pallas_src>
import functools

import jax
import jax.numpy as jnp
from jax.experimental import pallas as pl
from jax.experimental.pallas import tpu as pltpu


# ----------------------------------------------------------------------------
# In-kernel helpers
# ----------------------------------------------------------------------------
def _apply_act(y, activation):
    if activation == "relu":
        return jnp.maximum(y, 0.0)
    return jnp.tanh(y)


# ----------------------------------------------------------------------------
# Fused kernel: per batch element b
#   convT = act(w_convT @ patches_t[b] + b_conv)          (C_out, P)   stays in VMEM
#   h1    = act(sum_c convT[c, :] @ w_fc1_3d[c] + b_fc1)  (1, H1)
#   out   = act(h1 @ w_fc2 + b_fc2)                       (1, H2)
# ----------------------------------------------------------------------------
def _fused_cnn_kernel(p_ref, wc_ref, bc_ref, w1_ref, b1_ref, w2_ref, b2_ref,
                      o_ref, conv_buf, *, activation, c_out):
    # ---- conv as a (transposed) matmul: (C_out, Kd) @ (Kd, P) -> (C_out, P) ----
    conv = jnp.dot(wc_ref[...], p_ref[0], preferred_element_type=jnp.float32)
    conv = _apply_act(conv + bc_ref[...], activation)       # bias broadcast on lanes
    conv_buf[...] = conv                                     # f32 VMEM scratch

    # ---- fc1: accumulate over conv output channels (no in-kernel flatten) ----
    h1 = b1_ref[...]                                          # (1, H1) f32
    for c in range(c_out):                                    # unrolled, static slices
        lhs = conv_buf[pl.ds(c, 1), :].astype(jnp.bfloat16)   # (1, P) bf16 MXU operand
        h1 = h1 + jnp.dot(lhs, w1_ref[c], preferred_element_type=jnp.float32)
    h1 = _apply_act(h1, activation)

    # ---- fc2 ----
    h2 = jnp.dot(h1.astype(jnp.bfloat16), w2_ref[...],
                 preferred_element_type=jnp.float32)
    h2 = _apply_act(h2 + b2_ref[...], activation)
    o_ref[0] = h2.astype(o_ref.dtype)


# ----------------------------------------------------------------------------
# Glue: im2col (wrapper-side slicing only), transposed & bf16.
#   result[b, (kh, kw, c), i*Wo + j] = x[b, c, i*stride + kh, j*stride + kw]
# ----------------------------------------------------------------------------
def _im2col_t(x_bf16, K, stride):
    # TODO(synk): for large H/W replace im2col with in-kernel shifted accumulating
    # matmuls (K*K "arbitrary" grid axis + f32 acc scratch) to avoid the K*K blowup.
    B, C, H, W = x_bf16.shape
    Ho = (H - K) // stride + 1
    Wo = (W - K) // stride + 1
    cols = []
    for kh in range(K):
        for kw in range(K):
            cols.append(x_bf16[:, :, kh:kh + stride * Ho:stride,
                               kw:kw + stride * Wo:stride])
    patches = jnp.stack(cols, axis=1)                         # (B, K*K, C, Ho, Wo)
    return patches.reshape(B, K * K * C, Ho * Wo), Ho, Wo


# ----------------------------------------------------------------------------
# CNNLayer forward
# ----------------------------------------------------------------------------
def cnn_layer_forward(x, params, *, kernel_size=3, stride=1, use_relu=True):
    """x: (B, C, H, W) float32, values in [0, 255] like the PyTorch module."""
    act = "relu" if use_relu else "tanh"
    B, C, H, W = x.shape
    w_conv, b_conv, w_fc1, b_fc1, w_fc2, b_fc2 = params
    C_out = w_conv.shape[0]
    K = kernel_size
    Ho = (H - K) // stride + 1
    Wo = (W - K) // stride + 1
    P = Ho * Wo
    Kd = K * K * C
    H1 = w_fc1.shape[1]
    H2 = w_fc2.shape[1]
    assert w_fc1.shape[0] == C_out * P, "fc1 in_features mismatch"

    # --- trace-time weight prep (tiny one-off ops) ---
    # fold /255 into the conv weight; feature order (kh, kw, c) matches the patches.
    w_convT = (w_conv.transpose(0, 2, 3, 1).reshape(C_out, Kd)
               * jnp.float32(1.0 / 255.0)).astype(jnp.bfloat16)
    # PyTorch Flatten of (B, C_out, Ho, Wo) is channel-major: row c*P + p of w_fc1
    # multiplies conv[c, p]; viewing it as (C_out, P, H1) needs NO permutation.
    w_fc1_3d = w_fc1.reshape(C_out, P, H1).astype(jnp.bfloat16)
    w_fc2_b16 = w_fc2.astype(jnp.bfloat16)

    # --- bf16 im2col (transposed per batch element): (B, Kd, P) ---
    patches_t, _, _ = _im2col_t(x.astype(jnp.bfloat16), K, stride)

    flops = B * (2 * C_out * Kd * P + 2 * C_out * P * H1 + 2 * H1 * H2)
    transcendentals = B * (C_out * P + H1 + H2) if act == "tanh" else 0
    bytes_accessed = (B * Kd * P * 2 + C_out * Kd * 2 + C_out * P * H1 * 2
                      + H1 * H2 * 2 + (C_out + H1 + H2) * 4 + B * H2 * 4)

    kernel = functools.partial(_fused_cnn_kernel, activation=act, c_out=C_out)
    # TODO(synk): for realistic obs sizes (flat ~ 1e5+) single-buffer the constant
    # weight specs (pipeline_mode=pl.Buffered(1)) and K-tile fc1 to stay inside
    # v7x's 64 MiB VMEM; unnecessary at these shapes.
    out = pl.pallas_call(
        kernel,
        out_shape=jax.ShapeDtypeStruct((B, 1, H2), jnp.float32),
        grid=(B,),
        in_specs=[
            pl.BlockSpec((1, Kd, P), lambda b: (b, 0, 0)),      # per-batch patches
            pl.BlockSpec((C_out, Kd), lambda b: (0, 0)),        # conv weight (const)
            pl.BlockSpec((C_out, 1), lambda b: (0, 0)),         # conv bias   (const)
            pl.BlockSpec((C_out, P, H1), lambda b: (0, 0, 0)),  # fc1 weight  (const)
            pl.BlockSpec((1, H1), lambda b: (0, 0)),            # fc1 bias    (const)
            pl.BlockSpec((H1, H2), lambda b: (0, 0)),           # fc2 weight  (const)
            pl.BlockSpec((1, H2), lambda b: (0, 0)),            # fc2 bias    (const)
        ],
        out_specs=pl.BlockSpec((1, 1, H2), lambda b: (b, 0, 0)),
        scratch_shapes=[pltpu.VMEM((C_out, P), jnp.float32)],    # conv activation
        compiler_params=pltpu.CompilerParams(
            dimension_semantics=("parallel",),                   # >=2 steps -> both v7x TCs
            vmem_limit_bytes=32 * 1024 * 1024),
        cost_estimate=pl.CostEstimate(flops=flops,
                                      transcendentals=transcendentals,
                                      bytes_accessed=bytes_accessed),
    )(patches_t, w_convT,
      b_conv.reshape(C_out, 1).astype(jnp.float32),
      w_fc1_3d, b_fc1.reshape(1, H1).astype(jnp.float32),
      w_fc2_b16, b_fc2.reshape(1, H2).astype(jnp.float32))
    return out.reshape(B, H2)


# ----------------------------------------------------------------------------
# Pure-JAX/XLA reference of the same module (independent of the im2col path)
# ----------------------------------------------------------------------------
def _reference_forward(x, params, *, kernel_size, stride, use_relu):
    w_conv, b_conv, w_fc1, b_fc1, w_fc2, b_fc2 = params
    actf = (lambda v: jnp.maximum(v, 0.0)) if use_relu else jnp.tanh
    xs = x / 255.0
    conv = jax.lax.conv_general_dilated(
        xs, w_conv, window_strides=(stride, stride), padding="VALID",
        dimension_numbers=("NCHW", "OIHW", "NCHW"))
    conv = actf(conv + b_conv.reshape(1, -1, 1, 1))
    flat = conv.reshape(x.shape[0], -1)                # PyTorch Flatten (channel-major)
    h1 = actf(flat @ w_fc1 + b_fc1)
    return actf(h1 @ w_fc2 + b_fc2)


# ----------------------------------------------------------------------------
# Deterministic parameter init (synthetic; shapes match the PyTorch module)
# ----------------------------------------------------------------------------
def init_params(key, obs_shape, hidden_size, kernel_size=3, stride=1):
    # obs_shape is (channels, width, height) per the module docstring.
    C, Wd, Hd = obs_shape
    C_out = hidden_size // 2
    Ho = (Hd - kernel_size) // stride + 1
    Wo = (Wd - kernel_size) // stride + 1
    flat = C_out * Ho * Wo
    k1, k2, k3 = jax.random.split(key, 3)
    # TODO(synk): orthogonal / xavier-uniform init with gain not replicated; scaled-normal used.
    w_conv = jax.random.normal(k1, (C_out, C, kernel_size, kernel_size), jnp.float32) * 0.1
    b_conv = jnp.zeros((C_out,), jnp.float32)
    w_fc1 = jax.random.normal(k2, (flat, hidden_size), jnp.float32) * (1.0 / jnp.sqrt(flat))
    b_fc1 = jnp.zeros((hidden_size,), jnp.float32)
    w_fc2 = jax.random.normal(k3, (hidden_size, hidden_size), jnp.float32) * (1.0 / jnp.sqrt(hidden_size))
    b_fc2 = jnp.zeros((hidden_size,), jnp.float32)
    return (w_conv, b_conv, w_fc1, b_fc1, w_fc2, b_fc2)


if __name__ == "__main__":
    B = 2
    obs_shape = (4, 16, 16)     # (channels, width, height)
    hidden_size = 32
    kernel_size, stride = 3, 1

    key = jax.random.PRNGKey(0)
    k_x, k_p = jax.random.split(key)
    x = jax.random.uniform(k_x, (B,) + obs_shape, jnp.float32, 0.0, 255.0)  # NCHW
    params = init_params(k_p, obs_shape, hidden_size, kernel_size, stride)

    fwd = jax.jit(functools.partial(cnn_layer_forward,
                                    kernel_size=kernel_size,
                                    stride=stride,
                                    use_relu=True))
    out = jax.block_until_ready(fwd(x, params))
    assert out.shape == (B, hidden_size), out.shape

    # bf16 MXU path vs f32 XLA reference: expect ~1e-3 level deviation; tolerance 3e-2.
    ref = _reference_forward(x, params, kernel_size=kernel_size, stride=stride, use_relu=True)
    max_err = float(jnp.max(jnp.abs(out - ref)))
    assert max_err < 3e-2, f"max abs err vs reference: {max_err}"
    print("KERNEL_OK")
</pallas_src>

<mosaic_0001>
module attributes {stable_mosaic.version = 11 : i64} {
  func.func @_fused_cnn_kernel(%arg0: i32, %arg1: memref<1x36x196xbf16, #tpu.memory_space<vmem>>, %arg2: memref<16x36xbf16, #tpu.memory_space<vmem>>, %arg3: memref<16x1xf32, #tpu.memory_space<vmem>>, %arg4: memref<16x196x32xbf16, #tpu.memory_space<vmem>>, %arg5: memref<1x32xf32, #tpu.memory_space<vmem>>, %arg6: memref<32x32xbf16, #tpu.memory_space<vmem>>, %arg7: memref<1x32xf32, #tpu.memory_space<vmem>>, %arg8: memref<1x1x32xf32, #tpu.memory_space<vmem>>, %arg9: memref<16x196xf32, #tpu.memory_space<vmem>>) attributes {dimension_semantics = [#tpu.dimension_semantics<parallel>], iteration_bounds = array<i64: 2>, scalar_prefetch = 0 : i64, scratch_operands = 1 : i64, tpu.core_type = #tpu.core_type<tc>, window_params = [{transform_indices = @transform_0, window_bounds = array<i64: 1, 36, 196>}, {pipeline_mode = #tpu.pipeline_mode<synchronous>, transform_indices = @transform_1, window_bounds = array<i64: 16, 36>}, {pipeline_mode = #tpu.pipeline_mode<synchronous>, transform_indices = @transform_2, window_bounds = array<i64: 16, 1>}, {pipeline_mode = #tpu.pipeline_mode<synchronous>, transform_indices = @transform_3, window_bounds = array<i64: 16, 196, 32>}, {pipeline_mode = #tpu.pipeline_mode<synchronous>, transform_indices = @transform_4, window_bounds = array<i64: 1, 32>}, {pipeline_mode = #tpu.pipeline_mode<synchronous>, transform_indices = @transform_5, window_bounds = array<i64: 32, 32>}, {pipeline_mode = #tpu.pipeline_mode<synchronous>, transform_indices = @transform_6, window_bounds = array<i64: 1, 32>}, {transform_indices = @transform_7, window_bounds = array<i64: 1, 1, 32>}]} {
    %c0 = arith.constant 0 : index
    %c0_0 = arith.constant 0 : index
    %0 = vector.load %arg2[%c0, %c0_0] : memref<16x36xbf16, #tpu.memory_space<vmem>>, vector<16x36xbf16>
    %c0_1 = arith.constant 0 : index
    %c0_2 = arith.constant 0 : index
    %c0_3 = arith.constant 0 : index
    %1 = vector.load %arg1[%c0_1, %c0_2, %c0_3] : memref<1x36x196xbf16, #tpu.memory_space<vmem>>, vector<1x36x196xbf16>
    %2 = vector.shape_cast %1 : vector<1x36x196xbf16> to vector<36x196xbf16>
    %cst = arith.constant dense<0.000000e+00> : vector<16x196xf32>
    %3 = tpu.matmul %0, %2, %cst {dimension_numbers = #tpu.dot_dimension_numbers<[1], [0], [0], [1], [0, 0, 1, 1], [], []>} : vector<16x36xbf16>, vector<36x196xbf16>, vector<16x196xf32> -> vector<16x196xf32>
    %c0_4 = arith.constant 0 : index
    %c0_5 = arith.constant 0 : index
    %4 = vector.load %arg3[%c0_4, %c0_5] : memref<16x1xf32, #tpu.memory_space<vmem>>, vector<16x1xf32>
    %5 = vector.broadcast %4 : vector<16x1xf32> to vector<16x196xf32>
    %6 = arith.addf %3, %5 : vector<16x196xf32>
    %cst_6 = arith.constant 0.000000e+00 : f32
    %7 = vector.broadcast %cst_6 : f32 to vector<16x196xf32>
    %8 = arith.maximumf %6, %7 : vector<16x196xf32>
    %c0_7 = arith.constant 0 : index
    %c0_8 = arith.constant 0 : index
    %9 = vector.load %arg9[%c0_7, %c0_8] : memref<16x196xf32, #tpu.memory_space<vmem>>, vector<16x196xf32>
    tpu.vector_store %arg9[%c0_7, %c0_8], %8 {strides = array<i32>} : memref<16x196xf32, #tpu.memory_space<vmem>>, vector<16x196xf32>,
    %c0_9 = arith.constant 0 : index
    %c0_10 = arith.constant 0 : index
    %10 = vector.load %arg5[%c0_9, %c0_10] : memref<1x32xf32, #tpu.memory_space<vmem>>, vector<1x32xf32>
    %c0_11 = arith.constant 0 : index
    %c0_12 = arith.constant 0 : index
    %11 = vector.load %arg9[%c0_11, %c0_12] : memref<16x196xf32, #tpu.memory_space<vmem>>, vector<1x196xf32>
    %12 = arith.truncf %11 : vector<1x196xf32> to vector<1x196xbf16>
    %c0_13 = arith.constant 0 : index
    %c0_14 = arith.constant 0 : index
    %c0_15 = arith.constant 0 : index
    %13 = vector.load %arg4[%c0_13, %c0_14, %c0_15] : memref<16x196x32xbf16, #tpu.memory_space<vmem>>, vector<1x196x32xbf16>
    %14 = vector.shape_cast %13 : vector<1x196x32xbf16> to vector<196x32xbf16>
    %cst_16 = arith.constant dense<0.000000e+00> : vector<1x32xf32>
    %15 = tpu.matmul %12, %14, %cst_16 {dimension_numbers = #tpu.dot_dimension_numbers<[1], [0], [0], [1], [0, 0, 1, 1], [], []>} : vector<1x196xbf16>, vector<196x32xbf16>, vector<1x32xf32> -> vector<1x32xf32>
    %16 = arith.addf %10, %15 : vector<1x32xf32>
    %c1 = arith.constant 1 : index
    %c0_17 = arith.constant 0 : index
    %17 = vector.load %arg9[%c1, %c0_17] : memref<16x196xf32, #tpu.memory_space<vmem>>, vector<1x196xf32>
    %18 = arith.truncf %17 : vector<1x196xf32> to vector<1x196xbf16>
    %c1_18 = arith.constant 1 : index
    %c0_19 = arith.constant 0 : index
    %c0_20 = arith.constant 0 : index
    %19 = vector.load %arg4[%c1_18, %c0_19, %c0_20] : memref<16x196x32xbf16, #tpu.memory_space<vmem>>, vector<1x196x32xbf16>
    %20 = vector.shape_cast %19 : vector<1x196x32xbf16> to vector<196x32xbf16>
    %cst_21 = arith.constant dense<0.000000e+00> : vector<1x32xf32>
    %21 = tpu.matmul %18, %20, %cst_21 {dimension_numbers = #tpu.dot_dimension_numbers<[1], [0], [0], [1], [0, 0, 1, 1], [], []>} : vector<1x196xbf16>, vector<196x32xbf16>, vector<1x32xf32> -> vector<1x32xf32>
    %22 = arith.addf %16, %21 : vector<1x32xf32>
    %c2 = arith.constant 2 : index
    %c0_22 = arith.constant 0 : index
    %23 = vector.load %arg9[%c2, %c0_22] : memref<16x196xf32, #tpu.memory_space<vmem>>, vector<1x196xf32>
    %24 = arith.truncf %23 : vector<1x196xf32> to vector<1x196xbf16>
    %c2_23 = arith.constant 2 : index
    %c0_24 = arith.constant 0 : index
    %c0_25 = arith.constant 0 : index
    %25 = vector.load %arg4[%c2_23, %c0_24, %c0_25] : memref<16x196x32xbf16, #tpu.memory_space<vmem>>, vector<1x196x32xbf16>
    %26 = vector.shape_cast %25 : vector<1x196x32xbf16> to vector<196x32xbf16>
    %cst_26 = arith.constant dense<0.000000e+00> : vector<1x32xf32>
    %27 = tpu.matmul %24, %26, %cst_26 {dimension_numbers = #tpu.dot_dimension_numbers<[1], [0], [0], [1], [0, 0, 1, 1], [], []>} : vector<1x196xbf16>, vector<196x32xbf16>, vector<1x32xf32> -> vector<1x32xf32>
    %28 = arith.addf %22, %27 : vector<1x32xf32>
    %c3 = arith.constant 3 : index
    %c0_27 = arith.constant 0 : index
    %29 = vector.load %arg9[%c3, %c0_27] : memref<16x196xf32, #tpu.memory_space<vmem>>, vector<1x196xf32>
    %30 = arith.truncf %29 : vector<1x196xf32> to vector<1x196xbf16>
    %c3_28 = arith.constant 3 : index
    %c0_29 = arith.constant 0 : index
    %c0_30 = arith.constant 0 : index
    %31 = vector.load %arg4[%c3_28, %c0_29, %c0_30] : memref<16x196x32xbf16, #tpu.memory_space<vmem>>, vector<1x196x32xbf16>
    %32 = vector.shape_cast %31 : vector<1x196x32xbf16> to vector<196x32xbf16>
    %cst_31 = arith.constant dense<0.000000e+00> : vector<1x32xf32>
    %33 = tpu.matmul %30, %32, %cst_31 {dimension_numbers = #tpu.dot_dimension_numbers<[1], [0], [0], [1], [0, 0, 1, 1], [], []>} : vector<1x196xbf16>, vector<196x32xbf16>, vector<1x32xf32> -> vector<1x32xf32>
    %34 = arith.addf %28, %33 : vector<1x32xf32>
    %c4 = arith.constant 4 : index
    %c0_32 = arith.constant 0 : index
    %35 = vector.load %arg9[%c4, %c0_32] : memref<16x196xf32, #tpu.memory_space<vmem>>, vector<1x196xf32>
    %36 = arith.truncf %35 : vector<1x196xf32> to vector<1x196xbf16>
    %c4_33 = arith.constant 4 : index
    %c0_34 = arith.constant 0 : index
    %c0_35 = arith.constant 0 : index
    %37 = vector.load %arg4[%c4_33, %c0_34, %c0_35] : memref<16x196x32xbf16, #tpu.memory_space<vmem>>, vector<1x196x32xbf16>
    %38 = vector.shape_cast %37 : vector<1x196x32xbf16> to vector<196x32xbf16>
    %cst_36 = arith.constant dense<0.000000e+00> : vector<1x32xf32>
    %39 = tpu.matmul %36, %38, %cst_36 {dimension_numbers = #tpu.dot_dimension_numbers<[1], [0], [0], [1], [0, 0, 1, 1], [], []>} : vector<1x196xbf16>, vector<196x32xbf16>, vector<1x32xf32> -> vector<1x32xf32>
    %40 = arith.addf %34, %39 : vector<1x32xf32>
    %c5 = arith.constant 5 : index
    %c0_37 = arith.constant 0 : index
    %41 = vector.load %arg9[%c5, %c0_37] : memref<16x196xf32, #tpu.memory_space<vmem>>, vector<1x196xf32>
    %42 = arith.truncf %41 : vector<1x196xf32> to vector<1x196xbf16>
    %c5_38 = arith.constant 5 : index
    %c0_39 = arith.constant 0 : index
    %c0_40 = arith.constant 0 : index
    %43 = vector.load %arg4[%c5_38, %c0_39, %c0_40] : memref<16x196x32xbf16, #tpu.memory_space<vmem>>, vector<1x196x32xbf16>
    %44 = vector.shape_cast %43 : vector<1x196x32xbf16> to vector<196x32xbf16>
    %cst_41 = arith.constant dense<0.000000e+00> : vector<1x32xf32>
    %45 = tpu.matmul %42, %44, %cst_41 {dimension_numbers = #tpu.dot_dimension_numbers<[1], [0], [0], [1], [0, 0, 1, 1], [], []>} : vector<1x196xbf16>, vector<196x32xbf16>, vector<1x32xf32> -> vector<1x32xf32>
    %46 = arith.addf %40, %45 : vector<1x32xf32>
    %c6 = arith.constant 6 : index
    %c0_42 = arith.constant 0 : index
    %47 = vector.load %arg9[%c6, %c0_42] : memref<16x196xf32, #tpu.memory_space<vmem>>, vector<1x196xf32>
    %48 = arith.truncf %47 : vector<1x196xf32> to vector<1x196xbf16>
    %c6_43 = arith.constant 6 : index
    %c0_44 = arith.constant 0 : index
    %c0_45 = arith.constant 0 : index
    %49 = vector.load %arg4[%c6_43, %c0_44, %c0_45] : memref<16x196x32xbf16, #tpu.memory_space<vmem>>, vector<1x196x32xbf16>
    %50 = vector.shape_cast %49 : vector<1x196x32xbf16> to vector<196x32xbf16>
    %cst_46 = arith.constant dense<0.000000e+00> : vector<1x32xf32>
    %51 = tpu.matmul %48, %50, %cst_46 {dimension_numbers = #tpu.dot_dimension_numbers<[1], [0], [0], [1], [0, 0, 1, 1], [], []>} : vector<1x196xbf16>, vector<196x32xbf16>, vector<1x32xf32> -> vector<1x32xf32>
    %52 = arith.addf %46, %51 : vector<1x32xf32>
    %c7 = arith.constant 7 : index
    %c0_47 = arith.constant 0 : index
    %53 = vector.load %arg9[%c7, %c0_47] : memref<16x196xf32, #tpu.memory_space<vmem>>, vector<1x196xf32>
    %54 = arith.truncf %53 : vector<1x196xf32> to vector<1x196xbf16>
    %c7_48 = arith.constant 7 : index
    %c0_49 = arith.constant 0 : index
    %c0_50 = arith.constant 0 : index
    %55 = vector.load %arg4[%c7_48, %c0_49, %c0_50] : memref<16x196x32xbf16, #tpu.memory_space<vmem>>, vector<1x196x32xbf16>
    %56 = vector.shape_cast %55 : vector<1x196x32xbf16> to vector<196x32xbf16>
    %cst_51 = arith.constant dense<0.000000e+00> : vector<1x32xf32>
    %57 = tpu.matmul %54, %56, %cst_51 {dimension_numbers = #tpu.dot_dimension_numbers<[1], [0], [0], [1], [0, 0, 1, 1], [], []>} : vector<1x196xbf16>, vector<196x32xbf16>, vector<1x32xf32> -> vector<1x32xf32>
    %58 = arith.addf %52, %57 : vector<1x32xf32>
    %c8 = arith.constant 8 : index
    %c0_52 = arith.constant 0 : index
    %59 = vector.load %arg9[%c8, %c0_52] : memref<16x196xf32, #tpu.memory_space<vmem>>, vector<1x196xf32>
    %60 = arith.truncf %59 : vector<1x196xf32> to vector<1x196xbf16>
    %c8_53 = arith.constant 8 : index
    %c0_54 = arith.constant 0 : index
    %c0_55 = arith.constant 0 : index
    %61 = vector.load %arg4[%c8_53, %c0_54, %c0_55] : memref<16x196x32xbf16, #tpu.memory_space<vmem>>, vector<1x196x32xbf16>
    %62 = vector.shape_cast %61 : vector<1x196x32xbf16> to vector<196x32xbf16>
    %cst_56 = arith.constant dense<0.000000e+00> : vector<1x32xf32>
    %63 = tpu.matmul %60, %62, %cst_56 {dimension_numbers = #tpu.dot_dimension_numbers<[1], [0], [0], [1], [0, 0, 1, 1], [], []>} : vector<1x196xbf16>, vector<196x32xbf16>, vector<1x32xf32> -> vector<1x32xf32>
    %64 = arith.addf %58, %63 : vector<1x32xf32>
    %c9 = arith.constant 9 : index
    %c0_57 = arith.constant 0 : index
    %65 = vector.load %arg9[%c9, %c0_57] : memref<16x196xf32, #tpu.memory_space<vmem>>, vector<1x196xf32>
    %66 = arith.truncf %65 : vector<1x196xf32> to vector<1x196xbf16>
    %c9_58 = arith.constant 9 : index
    %c0_59 = arith.constant 0 : index
    %c0_60 = arith.constant 0 : index
    %67 = vector.load %arg4[%c9_58, %c0_59, %c0_60] : memref<16x196x32xbf16, #tpu.memory_space<vmem>>, vector<1x196x32xbf16>
    %68 = vector.shape_cast %67 : vector<1x196x32xbf16> to vector<196x32xbf16>
    %cst_61 = arith.constant dense<0.000000e+00> : vector<1x32xf32>
    %69 = tpu.matmul %66, %68, %cst_61 {dimension_numbers = #tpu.dot_dimension_numbers<[1], [0], [0], [1], [0, 0, 1, 1], [], []>} : vector<1x196xbf16>, vector<196x32xbf16>, vector<1x32xf32> -> vector<1x32xf32>
    %70 = arith.addf %64, %69 : vector<1x32xf32>
    %c10 = arith.constant 10 : index
    %c0_62 = arith.constant 0 : index
    %71 = vector.load %arg9[%c10, %c0_62] : memref<16x196xf32, #tpu.memory_space<vmem>>, vector<1x196xf32>
    %72 = arith.truncf %71 : vector<1x196xf32> to vector<1x196xbf16>
    %c10_63 = arith.constant 10 : index
    %c0_64 = arith.constant 0 : index
    %c0_65 = arith.constant 0 : index
    %73 = vector.load %arg4[%c10_63, %c0_64, %c0_65] : memref<16x196x32xbf16, #tpu.memory_space<vmem>>, vector<1x196x32xbf16>
    %74 = vector.shape_cast %73 : vector<1x196x32xbf16> to vector<196x32xbf16>
    %cst_66 = arith.constant dense<0.000000e+00> : vector<1x32xf32>
    %75 = tpu.matmul %72, %74, %cst_66 {dimension_numbers = #tpu.dot_dimension_numbers<[1], [0], [0], [1], [0, 0, 1, 1], [], []>} : vector<1x196xbf16>, vector<196x32xbf16>, vector<1x32xf32> -> vector<1x32xf32>
    %76 = arith.addf %70, %75 : vector<1x32xf32>
    %c11 = arith.constant 11 : index
    %c0_67 = arith.constant 0 : index
    %77 = vector.load %arg9[%c11, %c0_67] : memref<16x196xf32, #tpu.memory_space<vmem>>, vector<1x196xf32>
    %78 = arith.truncf %77 : vector<1x196xf32> to vector<1x196xbf16>
    %c11_68 = arith.constant 11 : index
    %c0_69 = arith.constant 0 : index
    %c0_70 = arith.constant 0 : index
    %79 = vector.load %arg4[%c11_68, %c0_69, %c0_70] : memref<16x196x32xbf16, #tpu.memory_space<vmem>>, vector<1x196x32xbf16>
    %80 = vector.shape_cast %79 : vector<1x196x32xbf16> to vector<196x32xbf16>
    %cst_71 = arith.constant dense<0.000000e+00> : vector<1x32xf32>
    %81 = tpu.matmul %78, %80, %cst_71 {dimension_numbers = #tpu.dot_dimension_numbers<[1], [0], [0], [1], [0, 0, 1, 1], [], []>} : vector<1x196xbf16>, vector<196x32xbf16>, vector<1x32xf32> -> vector<1x32xf32>
    %82 = arith.addf %76, %81 : vector<1x32xf32>
    %c12 = arith.constant 12 : index
    %c0_72 = arith.constant 0 : index
    %83 = vector.load %arg9[%c12, %c0_72] : memref<16x196xf32, #tpu.memory_space<vmem>>, vector<1x196xf32>
    %84 = arith.truncf %83 : vector<1x196xf32> to vector<1x196xbf16>
    %c12_73 = arith.constant 12 : index
    %c0_74 = arith.constant 0 : index
    %c0_75 = arith.constant 0 : index
    %85 = vector.load %arg4[%c12_73, %c0_74, %c0_75] : memref<16x196x32xbf16, #tpu.memory_space<vmem>>, vector<1x196x32xbf16>
    %86 = vector.shape_cast %85 : vector<1x196x32xbf16> to vector<196x32xbf16>
    %cst_76 = arith.constant dense<0.000000e+00> : vector<1x32xf32>
    %87 = tpu.matmul %84, %86, %cst_76 {dimension_numbers = #tpu.dot_dimension_numbers<[1], [0], [0], [1], [0, 0, 1, 1], [], []>} : vector<1x196xbf16>, vector<196x32xbf16>, vector<1x32xf32> -> vector<1x32xf32>
    %88 = arith.addf %82, %87 : vector<1x32xf32>
    %c13 = arith.constant 13 : index
    %c0_77 = arith.constant 0 : index
    %89 = vector.load %arg9[%c13, %c0_77] : memref<16x196xf32, #tpu.memory_space<vmem>>, vector<1x196xf32>
    %90 = arith.truncf %89 : vector<1x196xf32> to vector<1x196xbf16>
    %c13_78 = arith.constant 13 : index
    %c0_79 = arith.constant 0 : index
    %c0_80 = arith.constant 0 : index
    %91 = vector.load %arg4[%c13_78, %c0_79, %c0_80] : memref<16x196x32xbf16, #tpu.memory_space<vmem>>, vector<1x196x32xbf16>
    %92 = vector.shape_cast %91 : vector<1x196x32xbf16> to vector<196x32xbf16>
    %cst_81 = arith.constant dense<0.000000e+00> : vector<1x32xf32>
    %93 = tpu.matmul %90, %92, %cst_81 {dimension_numbers = #tpu.dot_dimension_numbers<[1], [0], [0], [1], [0, 0, 1, 1], [], []>} : vector<1x196xbf16>, vector<196x32xbf16>, vector<1x32xf32> -> vector<1x32xf32>
    %94 = arith.addf %88, %93 : vector<1x32xf32>
    %c14 = arith.constant 14 : index
    %c0_82 = arith.constant 0 : index
    %95 = vector.load %arg9[%c14, %c0_82] : memref<16x196xf32, #tpu.memory_space<vmem>>, vector<1x196xf32>
    %96 = arith.truncf %95 : vector<1x196xf32> to vector<1x196xbf16>
    %c14_83 = arith.constant 14 : index
    %c0_84 = arith.constant 0 : index
    %c0_85 = arith.constant 0 : index
    %97 = vector.load %arg4[%c14_83, %c0_84, %c0_85] : memref<16x196x32xbf16, #tpu.memory_space<vmem>>, vector<1x196x32xbf16>
    %98 = vector.shape_cast %97 : vector<1x196x32xbf16> to vector<196x32xbf16>
    %cst_86 = arith.constant dense<0.000000e+00> : vector<1x32xf32>
    %99 = tpu.matmul %96, %98, %cst_86 {dimension_numbers = #tpu.dot_dimension_numbers<[1], [0], [0], [1], [0, 0, 1, 1], [], []>} : vector<1x196xbf16>, vector<196x32xbf16>, vector<1x32xf32> -> vector<1x32xf32>
    %100 = arith.addf %94, %99 : vector<1x32xf32>
    %c15 = arith.constant 15 : index
    %c0_87 = arith.constant 0 : index
    %101 = vector.load %arg9[%c15, %c0_87] : memref<16x196xf32, #tpu.memory_space<vmem>>, vector<1x196xf32>
    %102 = arith.truncf %101 : vector<1x196xf32> to vector<1x196xbf16>
    %c15_88 = arith.constant 15 : index
    %c0_89 = arith.constant 0 : index
    %c0_90 = arith.constant 0 : index
    %103 = vector.load %arg4[%c15_88, %c0_89, %c0_90] : memref<16x196x32xbf16, #tpu.memory_space<vmem>>, vector<1x196x32xbf16>
    %104 = vector.shape_cast %103 : vector<1x196x32xbf16> to vector<196x32xbf16>
    %cst_91 = arith.constant dense<0.000000e+00> : vector<1x32xf32>
    %105 = tpu.matmul %102, %104, %cst_91 {dimension_numbers = #tpu.dot_dimension_numbers<[1], [0], [0], [1], [0, 0, 1, 1], [], []>} : vector<1x196xbf16>, vector<196x32xbf16>, vector<1x32xf32> -> vector<1x32xf32>
    %106 = arith.addf %100, %105 : vector<1x32xf32>
    %cst_92 = arith.constant 0.000000e+00 : f32
    %107 = vector.broadcast %cst_92 : f32 to vector<1x32xf32>
    %108 = arith.maximumf %106, %107 : vector<1x32xf32>
    %109 = arith.truncf %108 : vector<1x32xf32> to vector<1x32xbf16>
    %c0_93 = arith.constant 0 : index
    %c0_94 = arith.constant 0 : index
    %110 = vector.load %arg6[%c0_93, %c0_94] : memref<32x32xbf16, #tpu.memory_space<vmem>>, vector<32x32xbf16>
    %cst_95 = arith.constant dense<0.000000e+00> : vector<1x32xf32>
    %111 = tpu.matmul %109, %110, %cst_95 {dimension_numbers = #tpu.dot_dimension_numbers<[1], [0], [0], [1], [0, 0, 1, 1], [], []>} : vector<1x32xbf16>, vector<32x32xbf16>, vector<1x32xf32> -> vector<1x32xf32>
    %c0_96 = arith.constant 0 : index
    %c0_97 = arith.constant 0 : index
    %112 = vector.load %arg7[%c0_96, %c0_97] : memref<1x32xf32, #tpu.memory_space<vmem>>, vector<1x32xf32>
    %113 = arith.addf %111, %112 : vector<1x32xf32>
    %cst_98 = arith.constant 0.000000e+00 : f32
    %114 = vector.broadcast %cst_98 : f32 to vector<1x32xf32>
    %115 = arith.maximumf %113, %114 : vector<1x32xf32>
    %c0_99 = arith.constant 0 : index
    %c0_100 = arith.constant 0 : index
    %c0_101 = arith.constant 0 : index
    %116 = vector.load %arg8[%c0_99, %c0_100, %c0_101] : memref<1x1x32xf32, #tpu.memory_space<vmem>>, vector<1x1x32xf32>
    %117 = vector.shape_cast %116 : vector<1x1x32xf32> to vector<1x32xf32>
    %118 = vector.shape_cast %115 : vector<1x32xf32> to vector<1x1x32xf32>
    tpu.vector_store %arg8[%c0_99, %c0_100, %c0_101], %118 {strides = array<i32>} : memref<1x1x32xf32, #tpu.memory_space<vmem>>, vector<1x1x32xf32>,
    return
  }
  func.func @transform_0(%arg0: i32) -> (i32, i32, i32) {
    %c0_i32 = arith.constant 0 : i32
    %c0_i32_0 = arith.constant 0 : i32
    %c0_i32_1 = arith.constant 0 : i32
    return %arg0, %c0_i32, %c0_i32_0 : i32, i32, i32
  }
  func.func @transform_1(%arg0: i32) -> (i32, i32) {
    %c0_i32 = arith.constant 0 : i32
    %c0_i32_0 = arith.constant 0 : i32
    %c0_i32_1 = arith.constant 0 : i32
    return %c0_i32, %c0_i32_0 : i32, i32
  }
  func.func @transform_2(%arg0: i32) -> (i32, i32) {
    %c0_i32 = arith.constant 0 : i32
    %c0_i32_0 = arith.constant 0 : i32
    %c0_i32_1 = arith.constant 0 : i32
    return %c0_i32, %c0_i32_0 : i32, i32
  }
  func.func @transform_3(%arg0: i32) -> (i32, i32, i32) {
    %c0_i32 = arith.constant 0 : i32
    %c0_i32_0 = arith.constant 0 : i32
    %c0_i32_1 = arith.constant 0 : i32
    %c0_i32_2 = arith.constant 0 : i32
    return %c0_i32, %c0_i32_0, %c0_i32_1 : i32, i32, i32
  }
  func.func @transform_4(%arg0: i32) -> (i32, i32) {
    %c0_i32 = arith.constant 0 : i32
    %c0_i32_0 = arith.constant 0 : i32
    %c0_i32_1 = arith.constant 0 : i32
    return %c0_i32, %c0_i32_0 : i32, i32
  }
  func.func @transform_5(%arg0: i32) -> (i32, i32) {
    %c0_i32 = arith.constant 0 : i32
    %c0_i32_0 = arith.constant 0 : i32
    %c0_i32_1 = arith.constant 0 : i32
    return %c0_i32, %c0_i32_0 : i32, i32
  }
  func.func @transform_6(%arg0: i32) -> (i32, i32) {
    %c0_i32 = arith.constant 0 : i32
    %c0_i32_0 = arith.constant 0 : i32
    %c0_i32_1 = arith.constant 0 : i32
    return %c0_i32, %c0_i32_0 : i32, i32
  }
  func.func @transform_7(%arg0: i32) -> (i32, i32, i32) {
    %c0_i32 = arith.constant 0 : i32
    %c0_i32_0 = arith.constant 0 : i32
    %c0_i32_1 = arith.constant 0 : i32
    return %arg0, %c0_i32, %c0_i32_0 : i32, i32, i32
  }
}

</mosaic_0001>

<llo_original>
// kernel: cnn_layer_forward.1
$region0: #{cnn_layer_forward.1}
  #allocation0 [shape = 'u32[]', space=smem, size = 0x4, offset = 0x4, fixed_abs, tag = 'smem constant byte address 0x4 - core index']
  #allocation1 [shape = 'u32[144,128]{1,0:T(1,128)}', space=vmem, size = 0x12000, scoped, tag = 'internal scratch']
  #allocation2 [shape = 'f32[16,196]{1,0:T(8,128)}', space=vmem, size = 0x4000, scoped, tag = 'scratch operand']
  %s0 = inlined_call_operand.vmem [shape: bf16[2,36,196], index: 0, kind: input, shape index: {}]
  %s1 = inlined_call_operand.vmem [shape: bf16[16,36], index: 1, kind: input, shape index: {}]
  %s2 = inlined_call_operand.vmem [shape: f32[16,1], index: 2, kind: input, shape index: {}]
  %s3 = inlined_call_operand.vmem [shape: bf16[16,196,32], index: 3, kind: input, shape index: {}]
  %s4 = inlined_call_operand.vmem [shape: f32[1,32], index: 4, kind: input, shape index: {}]
  %s5 = inlined_call_operand.vmem [shape: bf16[32,32], index: 5, kind: input, shape index: {}]
  %s6 = inlined_call_operand.vmem [shape: f32[1,32], index: 6, kind: input, shape index: {}]
  %s7 = inlined_call_operand.hbm [shape: f32[2,1,32], index: 7, kind: output, shape index: {}]
  %s8 = sld [smem:[#allocation0]]
  $region61: #{cnn_layer_forward.1} parent=0
    _
  %s10 = ssub.s32 1, %s8
  %s11 = scalar_select 0, %s10, %s8
  $region1: #{cnn_layer_forward.1} parent=0
    #allocation3 [shape = 'u8[1024]{0}', space=vmem, size = 0x400, scoped, tag = 'output window, operand 0']
    #allocation4 [shape = 's32[2]{0}', space=sflag, size = 0x8, scoped, tag = 'scoped memory for cnn_layer_forward.1']
    %12 = vsyncpa [#allocation4], 0
    %s13 = scalar_lea.sflag [#allocation4], 1
    %14 = vsyncpa %s13, 0
    loop: start=0, step=1, limit=4
    $region2: #{cnn_layer_forward.1} parent=1 // loop_pre_header
      _
    $region3: #{cnn_layer_forward.1} parent=1 // loop_header
      %s16 = sphi 0, %s20
      %p17 = scmp.ge.s32.totalorder %s16, 4
      %s26 = sphi 0, %s28
      %s29 = sphi 0, %s26
      %s30 = sphi 0, %s29
      %s46 = sphi 0, %s30
      %s50 = sphi 0, %s50
      %s52 = sphi 0, %s50
      %s53 = sphi 0, %s52
      %s67 = sphi 0, %s53
      %s71 = sphi 0, %s71
      %s73 = sphi 0, %s71
      %s74 = sphi 0, %s73
      %s88 = sphi 0, %s74
      %s92 = sphi 0, %s92
      %s94 = sphi 0, %s92
      %s95 = sphi 0, %s94
      %s109 = sphi 0, %s95
      %s113 = sphi 0, %s113
      %s115 = sphi 0, %s113
      %s116 = sphi 0, %s115
      %s130 = sphi 0, %s116
      %s134 = sphi 0, %s134
      %s136 = sphi 0, %s134
      %s137 = sphi 0, %s136
      %s151 = sphi 0, %s137
      %s155 = sphi 0, %s155
      %s157 = sphi 0, %s155
      %s158 = sphi 0, %s157
      %s172 = sphi 0, %s158
      %s178 = sphi 0, %s180
      %s181 = sphi 0, %s178
      %s182 = sphi 0, %s181
      %s198 = sphi 0, %s182
    $region4: #{cnn_layer_forward.1} parent=1 // loop_header_branch
      %19 = sbr.rel (%p17) target = $region8
    $region5: #{cnn_layer_forward.1} parent=1 // loop_body
      %s21 = ssub.s32 %s16, 1
      %s22 = ssub.s32 %s16, 2
      %s23 = sadd.s32 %s16, 1
      %s24 = ssub.s32 %s16, %s23
      %p25 = scmp.eq.s32.totalorder %s24, 0
      %s27 = sadd.s32 %s26, 1
      %s28 = scalar_select %p25, %s26, %s27
      %p31 = pneg %p25
      %p32 = scmp.eq.s32.totalorder %s16, 1
      %p33 = por %p31, %p32
      %p34 = scmp.ne.s32.totalorder %s26, %s29
      %p35 = scmp.eq.s32.totalorder %s16, 0
      %p36 = por %p34, %p35
      %p37 = scmp.ne.s32.totalorder %s26, %s29
      %p38 = scmp.eq.s32.totalorder %s21, 1
      %p39 = por %p37, %p38
      %p40 = scmp.ne.s32.totalorder %s29, %s30
      %p41 = scmp.eq.s32.totalorder %s21, 0
      %p42 = por %p40, %p41
      %p43 = scmp.ne.s32.totalorder %s29, %s30
      %p44 = scmp.eq.s32.totalorder %s22, 1
      %p45 = por %p43, %p44
      %p47 = scmp.ne.s32.totalorder %s30, %s46
      %p48 = scmp.eq.s32.totalorder %s22, 0
      %p49 = por %p47, %p48
      %s51 = sadd.s32 %s50, 1
      %p54 = scmp.eq.s32.totalorder %s16, 1
      %p55 = scmp.ne.s32.totalorder %s50, %s52
      %p56 = scmp.eq.s32.totalorder %s16, 0
      %p57 = por %p55, %p56
      %p58 = scmp.ne.s32.totalorder %s50, %s52
      %p59 = scmp.eq.s32.totalorder %s21, 1
      %p60 = por %p58, %p59
      %p61 = scmp.ne.s32.totalorder %s52, %s53
      %p62 = scmp.eq.s32.totalorder %s21, 0
      %p63 = por %p61, %p62
      %p64 = scmp.ne.s32.totalorder %s52, %s53
      %p65 = scmp.eq.s32.totalorder %s22, 1
      %p66 = por %p64, %p65
      %p68 = scmp.ne.s32.totalorder %s53, %s67
      %p69 = scmp.eq.s32.totalorder %s22, 0
      %p70 = por %p68, %p69
      %s72 = sadd.s32 %s71, 1
      %p75 = scmp.eq.s32.totalorder %s16, 1
      %p76 = scmp.ne.s32.totalorder %s71, %s73
      %p77 = scmp.eq.s32.totalorder %s16, 0
      %p78 = por %p76, %p77
      %p79 = scmp.ne.s32.totalorder %s71, %s73
      %p80 = scmp.eq.s32.totalorder %s21, 1
      %p81 = por %p79, %p80
      %p82 = scmp.ne.s32.totalorder %s73, %s74
      %p83 = scmp.eq.s32.totalorder %s21, 0
      %p84 = por %p82, %p83
      %p85 = scmp.ne.s32.totalorder %s73, %s74
      %p86 = scmp.eq.s32.totalorder %s22, 1
      %p87 = por %p85, %p86
      %p89 = scmp.ne.s32.totalorder %s74, %s88
      %p90 = scmp.eq.s32.totalorder %s22, 0
      %p91 = por %p89, %p90
      %s93 = sadd.s32 %s92, 1
      %p96 = scmp.eq.s32.totalorder %s16, 1
      %p97 = scmp.ne.s32.totalorder %s92, %s94
      %p98 = scmp.eq.s32.totalorder %s16, 0
      %p99 = por %p97, %p98
      %p100 = scmp.ne.s32.totalorder %s92, %s94
      %p101 = scmp.eq.s32.totalorder %s21, 1
      %p102 = por %p100, %p101
      %p103 = scmp.ne.s32.totalorder %s94, %s95
      %p104 = scmp.eq.s32.totalorder %s21, 0
      %p105 = por %p103, %p104
      %p106 = scmp.ne.s32.totalorder %s94, %s95
      %p107 = scmp.eq.s32.totalorder %s22, 1
      %p108 = por %p106, %p107
      %p110 = scmp.ne.s32.totalorder %s95, %s109
      %p111 = scmp.eq.s32.totalorder %s22, 0
      %p112 = por %p110, %p111
      %s114 = sadd.s32 %s113, 1
      %p117 = scmp.eq.s32.totalorder %s16, 1
      %p118 = scmp.ne.s32.totalorder %s113, %s115
      %p119 = scmp.eq.s32.totalorder %s16, 0
      %p120 = por %p118, %p119
      %p121 = scmp.ne.s32.totalorder %s113, %s115
      %p122 = scmp.eq.s32.totalorder %s21, 1
      %p123 = por %p121, %p122
      %p124 = scmp.ne.s32.totalorder %s115, %s116
      %p125 = scmp.eq.s32.totalorder %s21, 0
      %p126 = por %p124, %p125
      %p127 = scmp.ne.s32.totalorder %s115, %s116
      %p128 = scmp.eq.s32.totalorder %s22, 1
      %p129 = por %p127, %p128
      %p131 = scmp.ne.s32.totalorder %s116, %s130
      %p132 = scmp.eq.s32.totalorder %s22, 0
      %p133 = por %p131, %p132
      %s135 = sadd.s32 %s134, 1
      %p138 = scmp.eq.s32.totalorder %s16, 1
      %p139 = scmp.ne.s32.totalorder %s134, %s136
      %p140 = scmp.eq.s32.totalorder %s16, 0
      %p141 = por %p139, %p140
      %p142 = scmp.ne.s32.totalorder %s134, %s136
      %p143 = scmp.eq.s32.totalorder %s21, 1
      %p144 = por %p142, %p143
      %p145 = scmp.ne.s32.totalorder %s136, %s137
      %p146 = scmp.eq.s32.totalorder %s21, 0
      %p147 = por %p145, %p146
      %p148 = scmp.ne.s32.totalorder %s136, %s137
      %p149 = scmp.eq.s32.totalorder %s22, 1
      %p150 = por %p148, %p149
      %p152 = scmp.ne.s32.totalorder %s137, %s151
      %p153 = scmp.eq.s32.totalorder %s22, 0
      %p154 = por %p152, %p153
      %s156 = sadd.s32 %s155, 1
      %p159 = scmp.eq.s32.totalorder %s16, 1
      %p160 = scmp.ne.s32.totalorder %s155, %s157
      %p161 = scmp.eq.s32.totalorder %s16, 0
      %p162 = por %p160, %p161
      %p163 = scmp.ne.s32.totalorder %s155, %s157
      %p164 = scmp.eq.s32.totalorder %s21, 1
      %p165 = por %p163, %p164
      %p166 = scmp.ne.s32.totalorder %s157, %s158
      %p167 = scmp.eq.s32.totalorder %s21, 0
      %p168 = por %p166, %p167
      %p169 = scmp.ne.s32.totalorder %s157, %s158
      %p170 = scmp.eq.s32.totalorder %s22, 1
      %p171 = por %p169, %p170
      %p173 = scmp.ne.s32.totalorder %s158, %s172
      %p174 = scmp.eq.s32.totalorder %s22, 0
      %p175 = por %p173, %p174
      %s176 = ssub.s32 %s16, %s23
      %p177 = scmp.eq.s32.totalorder %s176, 0
      %s179 = sadd.s32 %s178, 1
      %s180 = scalar_select %p177, %s178, %s179
      %p183 = pneg %p177
      %p184 = scmp.eq.s32.totalorder %s16, 1
      %p185 = por %p183, %p184
      %p186 = scmp.ne.s32.totalorder %s178, %s181
      %p187 = scmp.eq.s32.totalorder %s16, 0
      %p188 = por %p186, %p187
      %p189 = scmp.ne.s32.totalorder %s178, %s181
      %p190 = scmp.eq.s32.totalorder %s21, 1
      %p191 = por %p189, %p190
      %p192 = scmp.ne.s32.totalorder %s181, %s182
      %p193 = scmp.eq.s32.totalorder %s21, 0
      %p194 = por %p192, %p193
      %p195 = scmp.ne.s32.totalorder %s181, %s182
      %p196 = scmp.eq.s32.totalorder %s22, 1
      %p197 = por %p195, %p196
      %p199 = scmp.ne.s32.totalorder %s182, %s198
      %p200 = scmp.eq.s32.totalorder %s22, 0
      %p201 = por %p199, %p200
      %p202 = scmp.le.s32.totalorder 1, %s16
      %p203 = scmp.lt.s32.totalorder %s16, 3
      %p204 = pnand %p202, %p203
      %p205 = pneg %p204
      // Predicated region
      $region9: #{cnn_layer_forward.1} parent=5 // pred_check
        _
      $region10: #{cnn_layer_forward.1} parent=5 // pred_check_branch
        %207 = sbr.rel (%p204) target = $region12
      $region11: #{cnn_layer_forward.1} parent=5 // pred_region
        %s208 = ssub.s32 %s16, 1
        // Predicated region
        $region13: #{cnn_layer_forward.1} parent=11 // pred_check
          %p209 = pneg %p63
        $region14: #{cnn_layer_forward.1} parent=11 // pred_check_branch
          %211 = sbr.rel (%p209) target = $region16
        $region15: #{cnn_layer_forward.1} parent=11 // pred_region
          _
        $region16: #{cnn_layer_forward.1} parent=11 // pred_fallthru
          _
        // Predicated region
        $region17: #{cnn_layer_forward.1} parent=11 // pred_check
          %p212 = pneg %p84
        $region18: #{cnn_layer_forward.1} parent=11 // pred_check_branch
          %214 = sbr.rel (%p212) target = $region20
        $region19: #{cnn_layer_forward.1} parent=11 // pred_region
          _
        $region20: #{cnn_layer_forward.1} parent=11 // pred_fallthru
          _
        // Predicated region
        $region21: #{cnn_layer_forward.1} parent=11 // pred_check
          %p215 = pneg %p105
        $region22: #{cnn_layer_forward.1} parent=11 // pred_check_branch
          %217 = sbr.rel (%p215) target = $region24
        $region23: #{cnn_layer_forward.1} parent=11 // pred_region
          _
        $region24: #{cnn_layer_forward.1} parent=11 // pred_fallthru
          _
        // Predicated region
        $region25: #{cnn_layer_forward.1} parent=11 // pred_check
          %p218 = pneg %p126
        $region26: #{cnn_layer_forward.1} parent=11 // pred_check_branch
          %220 = sbr.rel (%p218) target = $region28
        $region27: #{cnn_layer_forward.1} parent=11 // pred_region
          _
        $region28: #{cnn_layer_forward.1} parent=11 // pred_fallthru
          _
        // Predicated region
        $region29: #{cnn_layer_forward.1} parent=11 // pred_check
          %p221 = pneg %p147
        $region30: #{cnn_layer_forward.1} parent=11 // pred_check_branch
          %223 = sbr.rel (%p221) target = $region32
        $region31: #{cnn_layer_forward.1} parent=11 // pred_region
          _
        $region32: #{cnn_layer_forward.1} parent=11 // pred_fallthru
          _
        // Predicated region
        $region33: #{cnn_layer_forward.1} parent=11 // pred_check
          %p224 = pneg %p168
        $region34: #{cnn_layer_forward.1} parent=11 // pred_check_branch
          %226 = sbr.rel (%p224) target = $region36
        $region35: #{cnn_layer_forward.1} parent=11 // pred_region
          _
        $region36: #{cnn_layer_forward.1} parent=11 // pred_fallthru
          _
      $region12: #{cnn_layer_forward.1} parent=5 // pred_fallthru
        _
      %p227 = scmp.lt.s32.totalorder %s16, 2
      // Predicated region
      $region37: #{cnn_layer_forward.1} parent=5 // pred_check
        %p228 = pneg %p227
      $region38: #{cnn_layer_forward.1} parent=5 // pred_check_branch
        %230 = sbr.rel (%p228) target = $region40
      $region39: #{cnn_layer_forward.1} parent=5 // pred_region
        // Predicated region
        $region41: #{cnn_layer_forward.1} parent=39 // pred_check
          %p231 = pneg %p36
        $region42: #{cnn_layer_forward.1} parent=39 // pred_check_branch
          %233 = sbr.rel (%p231) target = $region44
        $region43: #{cnn_layer_forward.1} parent=39 // pred_region
          %p234 = scmp.lt.s32.totalorder %s16, 1
          %s235 = scalar_select %p234, %s16, 1
          %s236 = smul.addr %s235, 10
          %s237 = smul.addr %s236, 4
          %s238 = scalar_lea.vmem %s0, %s237
        $region44: #{cnn_layer_forward.1} parent=39 // pred_fallthru
          _
      $region40: #{cnn_layer_forward.1} parent=5 // pred_fallthru
        _
      %p239 = scmp.le.s32.totalorder 1, %s16
      %p240 = scmp.lt.s32.totalorder %s16, 3
      %p241 = pnand %p239, %p240
      %p242 = pneg %p241
      // Predicated region
      $region45: #{cnn_layer_forward.1} parent=5 // pred_check
        _
      $region46: #{cnn_layer_forward.1} parent=5 // pred_check_branch
        %244 = sbr.rel (%p241) target = $region48
      $region47: #{cnn_layer_forward.1} parent=5 // pred_region
        %s245 = ssub.s32 %s16, 1
        %p246 = scmp.lt.s32.totalorder %s21, 1
        %s247 = scalar_select %p246, %s21, 1
        %s248 = smul.addr %s247, 10
        %s249 = smul.addr %s248, 4
        %s250 = scalar_lea.vmem %s0, %s249
        %p251 = pneg %p42
        %p252 = pneg %p39
        %p253 = pneg %p63
        %p254 = pneg %p60
        %p255 = pneg %p84
        %p256 = pneg %p81
        %p257 = pneg %p105
        %p258 = pneg %p102
        %p259 = pneg %p126
        %p260 = pneg %p123
        %p261 = pneg %p147
        %p262 = pneg %p144
        %p263 = pneg %p168
        %p264 = pneg %p165
        %p265 = pneg %p194
        %p266 = pneg %p191
        %s267 = sand.u32 %s181, 1
        %s268 = scalar_lea.sflag [#allocation4], %s267
        %s269 = sand.u32 %s181, 1
        %s270 = scalar_lea.vmem [#allocation3], %s269
        %p271 = scmp.lt.s32.totalorder %s21, 1
        %s272 = scalar_select %p271, %s21, 1
        %s273 = smul.addr %s272, 10
        %s274 = smul.addr %s273, 4
        %s275 = scalar_lea.vmem %s0, %s274
        %v277 = vld [vmem:[%s1] sm:$0xf]
        %v278 = vld [vmem:[%s1 + $0x4] sm:$0xf]
        %v279 = vld [vmem:[%s275] sm:$0xff]
        %v280 = vld [vmem:[%s275 + $0x8] sm:$0xff]
        %v281 = vld [vmem:[%s275 + $0x10] sm:$0xff]
        %v282 = vld [vmem:[%s275 + $0x18] sm:$0xff]
        %v283 = vld [vmem:[%s275 + $0x20] sm:$0x33]
        %v284 = vld [vmem:[%s2] sm:$0xff]
        %v285 = vld [vmem:[%s2 + $0x8] sm:$0xff]
        %287 = vset.pattern.permute.xlu0 0
        %288 = vperm.xlu0 %287, %v284
        %v289 = vpop.permute.xlu0 %288
        %292 = vset.pattern.permute.xlu0 0
        %293 = vperm.xlu0 %292, %v285
        %v294 = vpop.permute.xlu0 %293
        %v298 = vunpack.c.l.b16 %v277
        %v299 = vunpack.c.l.b16 %v278
        %v300 = vpack.c.b16 %v299, %v298
        %v306 = vunpack.c.l.b16 %v279
        %v307 = vunpack.c.h.b16 %v279
        %v308 = vunpack.c.l.b16 %v280
        %v309 = vunpack.c.h.b16 %v280
        %v310 = vunpack.c.l.b16 %v281
        %v311 = vunpack.c.h.b16 %v281
        %v312 = vunpack.c.l.b16 %v282
        %v313 = vunpack.c.h.b16 %v282
        %v314 = vunpack.c.l.b16 %v283
        %v315 = vunpack.c.h.b16 %v283
        %v316 = vpack.c.b16 %v308, %v306
        %v317 = vpack.c.b16 %v309, %v307
        %v318 = vpack.c.b16 %v312, %v310
        %v319 = vpack.c.b16 %v313, %v311
        %v320 = vpack.c.b16 %v314, %v314
        %v321 = vpack.c.b16 %v315, %v315
        %vm326 = vcmask 293888
        %v328 = vsel %vm326, %v300, 0
        %vm330 = vcmask 1041408
        %v332 = vsel %vm330, %v320, 0
        %v335 = vsel %vm330, %v321, 0
        %337 = vmatprep.subr.bf16.mxu0 %v317
        %338 = vmatpush1.bf16.msra.mxu0 %v316
        %339 = vmatprep.subr.bf16.mxu0 %v319
        %340 = vmatpush1.bf16.msra.mxu0 %v318
        %341 = vmatprep.subr.bf16.mxu0 %v335
        %342 = vmatpush1.bf16.msra.mxu0 %v332
        %343 = vmatprep.subr.bf16.mxu0 0
        %344 = vmatpush1.bf16.msra.mxu0 0
        %345 = vmatprep.subr.bf16.mxu0 0
        %346 = vmatpush1.bf16.msra.mxu0 0
        %347 = vmatprep.subr.bf16.mxu0 0
        %348 = vmatpush1.bf16.msra.mxu0 0
        %349 = vmatprep.subr.bf16.mxu0 0
        %350 = vmatpush1.bf16.msra.mxu0 0
        %351 = vmatprep.subr.bf16.mxu0 0
        %352 = vmatpush1.bf16.msra.mxu0 0
        %353 = vmatprep.subr.bf16.mxu0 0
        %354 = vmatpush1.bf16.msra.mxu0 0
        %355 = vmatprep.subr.bf16.mxu0 0
        %356 = vmatpush1.bf16.msra.mxu0 0
        %357 = vmatprep.subr.bf16.mxu0 0
        %358 = vmatpush1.bf16.msra.mxu0 0
        %359 = vmatprep.subr.bf16.mxu0 0
        %360 = vmatpush1.bf16.msra.mxu0 0
        %361 = vmatprep.subr.bf16.mxu0 0
        %362 = vmatpush1.bf16.msra.mxu0 0
        %363 = vmatprep.subr.bf16.mxu0 0
        %364 = vmatpush1.bf16.msra.mxu0 0
        %365 = vmatprep.subr.bf16.mxu0 0
        %366 = vmatpush1.bf16.msra.mxu0 0
        %367 = vmatprep.subr.bf16.mxu0 0
        %368 = vmatpush1.bf16.msra.mxu0 0
        %369 = vmatprep.mubr.bf16.mxu0 0
        %370 = vmatmul.mubr.bf16.gmra.mrb[0].mxu0 %v328
        %v371 = vpop.f32.mrb[0].mxu0
        %v372 = vadd.f32 %v289, %v371
        %v373 = vpop.f32.mrb[0].mxu0
        %v374 = vadd.f32 %v289, %v373
        %v375 = vpop.f32.mrb[0].mxu0
        %v376 = vadd.f32 %v294, %v375
        %v377 = vpop.f32.mrb[0].mxu0
        %v378 = vadd.f32 %v294, %v377
        %379 = vdwg.mxu0
        %v380 = vmax.f32 %v372, 0.0
        %v381 = vmax.f32 %v374, 0.0
        %v382 = vmax.f32 %v376, 0.0
        %v383 = vmax.f32 %v378, 0.0
        %384 = vst [vmem:[#allocation2] sm:$0xff] %v380
        %vm385 = vcmask 556032
        %386 = vst.msk [vmem:[#allocation2 + $0x8] sm:$0xff] %vm385, %v381
        %387 = vst [vmem:[#allocation2 + $0x10] sm:$0xff] %v382
        %388 = vst.msk [vmem:[#allocation2 + $0x18] sm:$0xff] %vm385, %v383
        %v389 = vld [vmem:[%s4] sm:$0x1]
        %v390 = vld [vmem:[#allocation2] ss:$8 sm:$0x3]
        %v392 = vlaneseq
        %v393 = vshrl.u32 %v392, 7
        %v394 = vsub.s32 0, %v393
        %v395 = vrot.slane %v390, %v394
        %v396 = vlaneseq
        %v397 = vshrl.u32 %v396, 7
        %v398 = vsub.s32 1, %v397
        %v399 = vrot.slane %v390, %v398
        %v402 = vpack.c.bf16 %v395, %v395
        %v403 = vpack.c.bf16 %v399, %v399
        %v404 = vld [vmem:[%s3] sm:$0xf]
        %v405 = vld [vmem:[%s3 + $0x4] sm:$0xf]
        %v406 = vld [vmem:[%s3 + $0x8] sm:$0xf]
        %v407 = vld [vmem:[%s3 + $0xc] sm:$0xf]
        %v408 = vld [vmem:[%s3 + $0x10] sm:$0xf]
        %v409 = vld [vmem:[%s3 + $0x14] sm:$0xf]
        %v410 = vld [vmem:[%s3 + $0x18] sm:$0xf]
        %v411 = vld [vmem:[%s3 + $0x1c] sm:$0xf]
        %v412 = vld [vmem:[%s3 + $0x20] sm:$0xf]
        %v413 = vld [vmem:[%s3 + $0x24] sm:$0xf]
        %v414 = vld [vmem:[%s3 + $0x28] sm:$0xf]
        %v415 = vld [vmem:[%s3 + $0x2c] sm:$0xf]
        %v416 = vld [vmem:[%s3 + $0x30] sm:$0xf]
        %v417 = vld [vmem:[%s3 + $0x34] sm:$0xf]
        %v418 = vld [vmem:[%s3 + $0x38] sm:$0xf]
        %v419 = vld [vmem:[%s3 + $0x3c] sm:$0xf]
        %v420 = vld [vmem:[%s3 + $0x40] sm:$0xf]
        %v421 = vld [vmem:[%s3 + $0x44] sm:$0xf]
        %v422 = vld [vmem:[%s3 + $0x48] sm:$0xf]
        %v423 = vld [vmem:[%s3 + $0x4c] sm:$0xf]
        %v424 = vld [vmem:[%s3 + $0x50] sm:$0xf]
        %v425 = vld [vmem:[%s3 + $0x54] sm:$0xf]
        %v426 = vld [vmem:[%s3 + $0x58] sm:$0xf]
        %v427 = vld [vmem:[%s3 + $0x5c] sm:$0xf]
        %v428 = vld [vmem:[%s3 + $0x60] sm:$0x3]
        %v454 = vunpack.c.l.b16 %v404
        %v455 = vunpack.c.l.b16 %v405
        %v456 = vunpack.c.l.b16 %v406
        %v457 = vunpack.c.l.b16 %v407
        %v458 = vunpack.c.l.b16 %v408
        %v459 = vunpack.c.l.b16 %v409
        %v460 = vunpack.c.l.b16 %v410
        %v461 = vunpack.c.l.b16 %v411
        %v462 = vunpack.c.l.b16 %v412
        %v463 = vunpack.c.l.b16 %v413
        %v464 = vunpack.c.l.b16 %v414
        %v465 = vunpack.c.l.b16 %v415
        %v466 = vunpack.c.l.b16 %v416
        %v467 = vunpack.c.l.b16 %v417
        %v468 = vunpack.c.l.b16 %v418
        %v469 = vunpack.c.l.b16 %v419
        %v470 = vunpack.c.l.b16 %v420
        %v471 = vunpack.c.l.b16 %v421
        %v472 = vunpack.c.l.b16 %v422
        %v473 = vunpack.c.l.b16 %v423
        %v474 = vunpack.c.l.b16 %v424
        %v475 = vunpack.c.l.b16 %v425
        %v476 = vunpack.c.l.b16 %v426
        %v477 = vunpack.c.l.b16 %v427
        %v478 = vunpack.c.l.b16 %v428
        %v479 = vpack.c.b16 %v455, %v454
        %v480 = vpack.c.b16 %v457, %v456
        %v481 = vpack.c.b16 %v459, %v458
        %v482 = vpack.c.b16 %v461, %v460
        %v483 = vpack.c.b16 %v463, %v462
        %v484 = vpack.c.b16 %v465, %v464
        %v485 = vpack.c.b16 %v467, %v466
        %v486 = vpack.c.b16 %v469, %v468
        %v487 = vpack.c.b16 %v471, %v470
        %v488 = vpack.c.b16 %v473, %v472
        %v489 = vpack.c.b16 %v475, %v474
        %v490 = vpack.c.b16 %v477, %v476
        %v491 = vpack.c.b16 %v478, %v478
        %v505 = vsel %vm385, %v403, 0
        %v508 = vsel %vm330, %v491, 0
        %510 = vmatprep.subr.bf16.mxu0 0
        %511 = vmatpush1.bf16.msra.mxu0 %v479
        %512 = vmatprep.subr.bf16.mxu0 0
        %513 = vmatpush1.bf16.msra.mxu0 %v480
        %514 = vmatprep.subr.bf16.mxu0 0
        %515 = vmatpush1.bf16.msra.mxu0 %v481
        %516 = vmatprep.subr.bf16.mxu0 0
        %517 = vmatpush1.bf16.msra.mxu0 %v482
        %518 = vmatprep.subr.bf16.mxu0 0
        %519 = vmatpush1.bf16.msra.mxu0 %v483
        %520 = vmatprep.subr.bf16.mxu0 0
        %521 = vmatpush1.bf16.msra.mxu0 %v484
        %522 = vmatprep.subr.bf16.mxu0 0
        %523 = vmatpush1.bf16.msra.mxu0 %v485
        %524 = vmatprep.subr.bf16.mxu0 0
        %525 = vmatpush1.bf16.msra.mxu0 %v486
        %526 = vmatprep.subr.bf16.mxu0 0
        %527 = vmatpush1.bf16.msra.mxu0 %v487
        %528 = vmatprep.subr.bf16.mxu0 0
        %529 = vmatpush1.bf16.msra.mxu0 %v488
        %530 = vmatprep.subr.bf16.mxu0 0
        %531 = vmatpush1.bf16.msra.mxu0 %v489
        %532 = vmatprep.subr.bf16.mxu0 0
        %533 = vmatpush1.bf16.msra.mxu0 %v490
        %534 = vmatprep.subr.bf16.mxu0 0
        %535 = vmatpush1.bf16.msra.mxu0 %v508
        %536 = vmatprep.subr.bf16.mxu0 0
        %537 = vmatpush1.bf16.msra.mxu0 0
        %538 = vmatprep.subr.bf16.mxu0 0
        %539 = vmatpush1.bf16.msra.mxu0 0
        %540 = vmatprep.subr.bf16.mxu0 0
        %541 = vmatpush1.bf16.msra.mxu0 0
        %542 = vmatprep.mubr.bf16.mxu0 %v505
        %543 = vmatmul.mubr.bf16.gmra.mrb[0].mxu0 %v402
        %v544 = vpop.f32.mrb[0].mxu0
        %v545 = vadd.f32 0.0, %v544
        %v546 = vpop.f32.mrb[0].mxu0
        %v547 = vpop.f32.mrb[0].mxu0
        %v548 = vpop.f32.mrb[0].mxu0
        %549 = vdwg.mxu0
        %v550 = vadd.f32 %v389, %v545
        %s551 = scalar_lea.vmem [#allocation2], 1
        %v552 = vld [vmem:[%s551] ss:$8 sm:$0x3]
        %v554 = vlaneseq
        %v555 = vshrl.u32 %v554, 7
        %v556 = vsub.s32 0, %v555
        %v557 = vrot.slane %v552, %v556
        %v558 = vlaneseq
        %v559 = vshrl.u32 %v558, 7
        %v560 = vsub.s32 1, %v559
        %v561 = vrot.slane %v552, %v560
        %v564 = vpack.c.bf16 %v557, %v557
        %v565 = vpack.c.bf16 %v561, %v561
        %s566 = scalar_lea.vmem %s3, 100
        %v567 = vld [vmem:[%s566] sm:$0xf]
        %v568 = vld [vmem:[%s566 + $0x4] sm:$0xf]
        %v569 = vld [vmem:[%s566 + $0x8] sm:$0xf]
        %v570 = vld [vmem:[%s566 + $0xc] sm:$0xf]
        %v571 = vld [vmem:[%s566 + $0x10] sm:$0xf]
        %v572 = vld [vmem:[%s566 + $0x14] sm:$0xf]
        %v573 = vld [vmem:[%s566 + $0x18] sm:$0xf]
        %v574 = vld [vmem:[%s566 + $0x1c] sm:$0xf]
        %v575 = vld [vmem:[%s566 + $0x20] sm:$0xf]
        %v576 = vld [vmem:[%s566 + $0x24] sm:$0xf]
        %v577 = vld [vmem:[%s566 + $0x28] sm:$0xf]
        %v578 = vld [vmem:[%s566 + $0x2c] sm:$0xf]
        %v579 = vld [vmem:[%s566 + $0x30] sm:$0xf]
        %v580 = vld [vmem:[%s566 + $0x34] sm:$0xf]
        %v581 = vld [vmem:[%s566 + $0x38] sm:$0xf]
        %v582 = vld [vmem:[%s566 + $0x3c] sm:$0xf]
        %v583 = vld [vmem:[%s566 + $0x40] sm:$0xf]
        %v584 = vld [vmem:[%s566 + $0x44] sm:$0xf]
        %v585 = vld [vmem:[%s566 + $0x48] sm:$0xf]
        %v586 = vld [vmem:[%s566 + $0x4c] sm:$0xf]
        %v587 = vld [vmem:[%s566 + $0x50] sm:$0xf]
        %v588 = vld [vmem:[%s566 + $0x54] sm:$0xf]
        %v589 = vld [vmem:[%s566 + $0x58] sm:$0xf]
        %v590 = vld [vmem:[%s566 + $0x5c] sm:$0xf]
        %v591 = vld [vmem:[%s566 + $0x60] sm:$0x3]
        %v617 = vunpack.c.l.b16 %v567
        %v618 = vunpack.c.l.b16 %v568
        %v619 = vunpack.c.l.b16 %v569
        %v620 = vunpack.c.l.b16 %v570
        %v621 = vunpack.c.l.b16 %v571
        %v622 = vunpack.c.l.b16 %v572
        %v623 = vunpack.c.l.b16 %v573
        %v624 = vunpack.c.l.b16 %v574
        %v625 = vunpack.c.l.b16 %v575
        %v626 = vunpack.c.l.b16 %v576
        %v627 = vunpack.c.l.b16 %v577
        %v628 = vunpack.c.l.b16 %v578
        %v629 = vunpack.c.l.b16 %v579
        %v630 = vunpack.c.l.b16 %v580
        %v631 = vunpack.c.l.b16 %v581
        %v632 = vunpack.c.l.b16 %v582
        %v633 = vunpack.c.l.b16 %v583
        %v634 = vunpack.c.l.b16 %v584
        %v635 = vunpack.c.l.b16 %v585
        %v636 = vunpack.c.l.b16 %v586
        %v637 = vunpack.c.l.b16 %v587
        %v638 = vunpack.c.l.b16 %v588
        %v639 = vunpack.c.l.b16 %v589
        %v640 = vunpack.c.l.b16 %v590
        %v641 = vunpack.c.l.b16 %v591
        %v642 = vpack.c.b16 %v618, %v617
        %v643 = vpack.c.b16 %v620, %v619
        %v644 = vpack.c.b16 %v622, %v621
        %v645 = vpack.c.b16 %v624, %v623
        %v646 = vpack.c.b16 %v626, %v625
        %v647 = vpack.c.b16 %v628, %v627
        %v648 = vpack.c.b16 %v630, %v629
        %v649 = vpack.c.b16 %v632, %v631
        %v650 = vpack.c.b16 %v634, %v633
        %v651 = vpack.c.b16 %v636, %v635
        %v652 = vpack.c.b16 %v638, %v637
        %v653 = vpack.c.b16 %v640, %v639
        %v654 = vpack.c.b16 %v641, %v641
        %v668 = vsel %vm385, %v565, 0
        %v671 = vsel %vm330, %v654, 0
        %673 = vmatprep.subr.bf16.mxu0 0
        %674 = vmatpush1.bf16.msra.mxu0 %v642
        %675 = vmatprep.subr.bf16.mxu0 0
        %676 = vmatpush1.bf16.msra.mxu0 %v643
        %677 = vmatprep.subr.bf16.mxu0 0
        %678 = vmatpush1.bf16.msra.mxu0 %v644
        %679 = vmatprep.subr.bf16.mxu0 0
        %680 = vmatpush1.bf16.msra.mxu0 %v645
        %681 = vmatprep.subr.bf16.mxu0 0
        %682 = vmatpush1.bf16.msra.mxu0 %v646
        %683 = vmatprep.subr.bf16.mxu0 0
        %684 = vmatpush1.bf16.msra.mxu0 %v647
        %685 = vmatprep.subr.bf16.mxu0 0
        %686 = vmatpush1.bf16.msra.mxu0 %v648
        %687 = vmatprep.subr.bf16.mxu0 0
        %688 = vmatpush1.bf16.msra.mxu0 %v649
        %689 = vmatprep.subr.bf16.mxu0 0
        %690 = vmatpush1.bf16.msra.mxu0 %v650
        %691 = vmatprep.subr.bf16.mxu0 0
        %692 = vmatpush1.bf16.msra.mxu0 %v651
        %693 = vmatprep.subr.bf16.mxu0 0
        %694 = vmatpush1.bf16.msra.mxu0 %v652
        %695 = vmatprep.subr.bf16.mxu0 0
        %696 = vmatpush1.bf16.msra.mxu0 %v653
        %697 = vmatprep.subr.bf16.mxu0 0
        %698 = vmatpush1.bf16.msra.mxu0 %v671
        %699 = vmatprep.subr.bf16.mxu0 0
        %700 = vmatpush1.bf16.msra.mxu0 0
        %701 = vmatprep.subr.bf16.mxu0 0
        %702 = vmatpush1.bf16.msra.mxu0 0
        %703 = vmatprep.subr.bf16.mxu0 0
        %704 = vmatpush1.bf16.msra.mxu0 0
        %705 = vmatprep.mubr.bf16.mxu0 %v668
        %706 = vmatmul.mubr.bf16.gmra.mrb[0].mxu0 %v564
        %v707 = vpop.f32.mrb[0].mxu0
        %v708 = vadd.f32 0.0, %v707
        %v709 = vpop.f32.mrb[0].mxu0
        %v710 = vpop.f32.mrb[0].mxu0
        %v711 = vpop.f32.mrb[0].mxu0
        %712 = vdwg.mxu0
        %v713 = vadd.f32 %v550, %v708
        %s714 = scalar_lea.vmem [#allocation2], 2
        %v715 = vld [vmem:[%s714] ss:$8 sm:$0x3]
        %v717 = vlaneseq
        %v718 = vshrl.u32 %v717, 7
        %v719 = vsub.s32 0, %v718
        %v720 = vrot.slane %v715, %v719
        %v721 = vlaneseq
        %v722 = vshrl.u32 %v721, 7
        %v723 = vsub.s32 1, %v722
        %v724 = vrot.slane %v715, %v723
        %v727 = vpack.c.bf16 %v720, %v720
        %v728 = vpack.c.bf16 %v724, %v724
        %s729 = scalar_lea.vmem %s3, 200
        %v730 = vld [vmem:[%s729] sm:$0xf]
        %v731 = vld [vmem:[%s729 + $0x4] sm:$0xf]
        %v732 = vld [vmem:[%s729 + $0x8] sm:$0xf]
        %v733 = vld [vmem:[%s729 + $0xc] sm:$0xf]
        %v734 = vld [vmem:[%s729 + $0x10] sm:$0xf]
        %v735 = vld [vmem:[%s729 + $0x14] sm:$0xf]
        %v736 = vld [vmem:[%s729 + $0x18] sm:$0xf]
        %v737 = vld [vmem:[%s729 + $0x1c] sm:$0xf]
        %v738 = vld [vmem:[%s729 + $0x20] sm:$0xf]
        %v739 = vld [vmem:[%s729 + $0x24] sm:$0xf]
        %v740 = vld [vmem:[%s729 + $0x28] sm:$0xf]
        %v741 = vld [vmem:[%s729 + $0x2c] sm:$0xf]
        %v742 = vld [vmem:[%s729 + $0x30] sm:$0xf]
        %v743 = vld [vmem:[%s729 + $0x34] sm:$0xf]
        %v744 = vld [vmem:[%s729 + $0x38] sm:$0xf]
        %v745 = vld [vmem:[%s729 + $0x3c] sm:$0xf]
        %v746 = vld [vmem:[%s729 + $0x40] sm:$0xf]
        %v747 = vld [vmem:[%s729 + $0x44] sm:$0xf]
        %v748 = vld [vmem:[%s729 + $0x48] sm:$0xf]
        %v749 = vld [vmem:[%s729 + $0x4c] sm:$0xf]
        %v750 = vld [vmem:[%s729 + $0x50] sm:$0xf]
        %v751 = vld [vmem:[%s729 + $0x54] sm:$0xf]
        %v752 = vld [vmem:[%s729 + $0x58] sm:$0xf]
        %v753 = vld [vmem:[%s729 + $0x5c] sm:$0xf]
        %v754 = vld [vmem:[%s729 + $0x60] sm:$0x3]
        %v780 = vunpack.c.l.b16 %v730
        %v781 = vunpack.c.l.b16 %v731
        %v782 = vunpack.c.l.b16 %v732
        %v783 = vunpack.c.l.b16 %v733
        %v784 = vunpack.c.l.b16 %v734
        %v785 = vunpack.c.l.b16 %v735
        %v786 = vunpack.c.l.b16 %v736
        %v787 = vunpack.c.l.b16 %v737
        %v788 = vunpack.c.l.b16 %v738
        %v789 = vunpack.c.l.b16 %v739
        %v790 = vunpack.c.l.b16 %v740
        %v791 = vunpack.c.l.b16 %v741
        %v792 = vunpack.c.l.b16 %v742
        %v793 = vunpack.c.l.b16 %v743
        %v794 = vunpack.c.l.b16 %v744
        %v795 = vunpack.c.l.b16 %v745
        %v796 = vunpack.c.l.b16 %v746
        %v797 = vunpack.c.l.b16 %v747
        %v798 = vunpack.c.l.b16 %v748
        %v799 = vunpack.c.l.b16 %v749
        %v800 = vunpack.c.l.b16 %v750
        %v801 = vunpack.c.l.b16 %v751
        %v802 = vunpack.c.l.b16 %v752
        %v803 = vunpack.c.l.b16 %v753
        %v804 = vunpack.c.l.b16 %v754
        %v805 = vpack.c.b16 %v781, %v780
        %v806 = vpack.c.b16 %v783, %v782
        %v807 = vpack.c.b16 %v785, %v784
        %v808 = vpack.c.b16 %v787, %v786
        %v809 = vpack.c.b16 %v789, %v788
        %v810 = vpack.c.b16 %v791, %v790
        %v811 = vpack.c.b16 %v793, %v792
        %v812 = vpack.c.b16 %v795, %v794
        %v813 = vpack.c.b16 %v797, %v796
        %v814 = vpack.c.b16 %v799, %v798
        %v815 = vpack.c.b16 %v801, %v800
        %v816 = vpack.c.b16 %v803, %v802
        %v817 = vpack.c.b16 %v804, %v804
        %v831 = vsel %vm385, %v728, 0
        %v834 = vsel %vm330, %v817, 0
        %836 = vmatprep.subr.bf16.mxu0 0
        %837 = vmatpush1.bf16.msra.mxu0 %v805
        %838 = vmatprep.subr.bf16.mxu0 0
        %839 = vmatpush1.bf16.msra.mxu0 %v806
        %840 = vmatprep.subr.bf16.mxu0 0
        %841 = vmatpush1.bf16.msra.mxu0 %v807
        %842 = vmatprep.subr.bf16.mxu0 0
        %843 = vmatpush1.bf16.msra.mxu0 %v808
        %844 = vmatprep.subr.bf16.mxu0 0
        %845 = vmatpush1.bf16.msra.mxu0 %v809
        %846 = vmatprep.subr.bf16.mxu0 0
        %847 = vmatpush1.bf16.msra.mxu0 %v810
        %848 = vmatprep.subr.bf16.mxu0 0
        %849 = vmatpush1.bf16.msra.mxu0 %v811
        %850 = vmatprep.subr.bf16.mxu0 0
        %851 = vmatpush1.bf16.msra.mxu0 %v812
        %852 = vmatprep.subr.bf16.mxu0 0
        %853 = vmatpush1.bf16.msra.mxu0 %v813
        %854 = vmatprep.subr.bf16.mxu0 0
        %855 = vmatpush1.bf16.msra.mxu0 %v814
        %856 = vmatprep.subr.bf16.mxu0 0
        %857 = vmatpush1.bf16.msra.mxu0 %v815
        %858 = vmatprep.subr.bf16.mxu0 0
        %859 = vmatpush1.bf16.msra.mxu0 %v816
        %860 = vmatprep.subr.bf16.mxu0 0
        %861 = vmatpush1.bf16.msra.mxu0 %v834
        %862 = vmatprep.subr.bf16.mxu0 0
        %863 = vmatpush1.bf16.msra.mxu0 0
        %864 = vmatprep.subr.bf16.mxu0 0
        %865 = vmatpush1.bf16.msra.mxu0 0
        %866 = vmatprep.subr.bf16.mxu0 0
        %867 = vmatpush1.bf16.msra.mxu0 0
        %868 = vmatprep.mubr.bf16.mxu0 %v831
        %869 = vmatmul.mubr.bf16.gmra.mrb[0].mxu0 %v727
        %v870 = vpop.f32.mrb[0].mxu0
        %v871 = vadd.f32 0.0, %v870
        %v872 = vpop.f32.mrb[0].mxu0
        %v873 = vpop.f32.mrb[0].mxu0
        %v874 = vpop.f32.mrb[0].mxu0
        %875 = vdwg.mxu0
        %v876 = vadd.f32 %v713, %v871
        %s877 = scalar_lea.vmem [#allocation2], 3
        %v878 = vld [vmem:[%s877] ss:$8 sm:$0x3]
        %v880 = vlaneseq
        %v881 = vshrl.u32 %v880, 7
        %v882 = vsub.s32 0, %v881
        %v883 = vrot.slane %v878, %v882
        %v884 = vlaneseq
        %v885 = vshrl.u32 %v884, 7
        %v886 = vsub.s32 1, %v885
        %v887 = vrot.slane %v878, %v886
        %v890 = vpack.c.bf16 %v883, %v883
        %v891 = vpack.c.bf16 %v887, %v887
        %s892 = scalar_lea.vmem %s3, 300
        %v893 = vld [vmem:[%s892] sm:$0xf]
        %v894 = vld [vmem:[%s892 + $0x4] sm:$0xf]
        %v895 = vld [vmem:[%s892 + $0x8] sm:$0xf]
        %v896 = vld [vmem:[%s892 + $0xc] sm:$0xf]
        %v897 = vld [vmem:[%s892 + $0x10] sm:$0xf]
        %v898 = vld [vmem:[%s892 + $0x14] sm:$0xf]
        %v899 = vld [vmem:[%s892 + $0x18] sm:$0xf]
        %v900 = vld [vmem:[%s892 + $0x1c] sm:$0xf]
        %v901 = vld [vmem:[%s892 + $0x20] sm:$0xf]
        %v902 = vld [vmem:[%s892 + $0x24] sm:$0xf]
        %v903 = vld [vmem:[%s892 + $0x28] sm:$0xf]
        %v904 = vld [vmem:[%s892 + $0x2c] sm:$0xf]
        %v905 = vld [vmem:[%s892 + $0x30] sm:$0xf]
        %v906 = vld [vmem:[%s892 + $0x34] sm:$0xf]
        %v907 = vld [vmem:[%s892 + $0x38] sm:$0xf]
        %v908 = vld [vmem:[%s892 + $0x3c] sm:$0xf]
        %v909 = vld [vmem:[%s892 + $0x40] sm:$0xf]
        %v910 = vld [vmem:[%s892 + $0x44] sm:$0xf]
        %v911 = vld [vmem:[%s892 + $0x48] sm:$0xf]
        %v912 = vld [vmem:[%s892 + $0x4c] sm:$0xf]
        %v913 = vld [vmem:[%s892 + $0x50] sm:$0xf]
        %v914 = vld [vmem:[%s892 + $0x54] sm:$0xf]
        %v915 = vld [vmem:[%s892 + $0x58] sm:$0xf]
        %v916 = vld [vmem:[%s892 + $0x5c] sm:$0xf]
        %v917 = vld [vmem:[%s892 + $0x60] sm:$0x3]
        %v943 = vunpack.c.l.b16 %v893
        %v944 = vunpack.c.l.b16 %v894
        %v945 = vunpack.c.l.b16 %v895
        %v946 = vunpack.c.l.b16 %v896
        %v947 = vunpack.c.l.b16 %v897
        %v948 = vunpack.c.l.b16 %v898
        %v949 = vunpack.c.l.b16 %v899
        %v950 = vunpack.c.l.b16 %v900
        %v951 = vunpack.c.l.b16 %v901
        %v952 = vunpack.c.l.b16 %v902
        %v953 = vunpack.c.l.b16 %v903
        %v954 = vunpack.c.l.b16 %v904
        %v955 = vunpack.c.l.b16 %v905
        %v956 = vunpack.c.l.b16 %v906
        %v957 = vunpack.c.l.b16 %v907
        %v958 = vunpack.c.l.b16 %v908
        %v959 = vunpack.c.l.b16 %v909
        %v960 = vunpack.c.l.b16 %v910
        %v961 = vunpack.c.l.b16 %v911
        %v962 = vunpack.c.l.b16 %v912
        %v963 = vunpack.c.l.b16 %v913
        %v964 = vunpack.c.l.b16 %v914
        %v965 = vunpack.c.l.b16 %v915
        %v966 = vunpack.c.l.b16 %v916
        %v967 = vunpack.c.l.b16 %v917
        %v968 = vpack.c.b16 %v944, %v943
        %v969 = vpack.c.b16 %v946, %v945
        %v970 = vpack.c.b16 %v948, %v947
        %v971 = vpack.c.b16 %v950, %v949
        %v972 = vpack.c.b16 %v952, %v951
        %v973 = vpack.c.b16 %v954, %v953
        %v974 = vpack.c.b16 %v956, %v955
        %v975 = vpack.c.b16 %v958, %v957
        %v976 = vpack.c.b16 %v960, %v959
        %v977 = vpack.c.b16 %v962, %v961
        %v978 = vpack.c.b16 %v964, %v963
        %v979 = vpack.c.b16 %v966, %v965
        %v980 = vpack.c.b16 %v967, %v967
        %v994 = vsel %vm385, %v891, 0
        %v997 = vsel %vm330, %v980, 0
        %999 = vmatprep.subr.bf16.mxu0 0
        %1000 = vmatpush1.bf16.msra.mxu0 %v968
        %1001 = vmatprep.subr.bf16.mxu0 0
        %1002 = vmatpush1.bf16.msra.mxu0 %v969
        %1003 = vmatprep.subr.bf16.mxu0 0
        %1004 = vmatpush1.bf16.msra.mxu0 %v970
        %1005 = vmatprep.subr.bf16.mxu0 0
        %1006 = vmatpush1.bf16.msra.mxu0 %v971
        %1007 = vmatprep.subr.bf16.mxu0 0
        %1008 = vmatpush1.bf16.msra.mxu0 %v972
        %1009 = vmatprep.subr.bf16.mxu0 0
        %1010 = vmatpush1.bf16.msra.mxu0 %v973
        %1011 = vmatprep.subr.bf16.mxu0 0
        %1012 = vmatpush1.bf16.msra.mxu0 %v974
        %1013 = vmatprep.subr.bf16.mxu0 0
        %1014 = vmatpush1.bf16.msra.mxu0 %v975
        %1015 = vmatprep.subr.bf16.mxu0 0
        %1016 = vmatpush1.bf16.msra.mxu0 %v976
        %1017 = vmatprep.subr.bf16.mxu0 0
        %1018 = vmatpush1.bf16.msra.mxu0 %v977
        %1019 = vmatprep.subr.bf16.mxu0 0
        %1020 = vmatpush1.bf16.msra.mxu0 %v978
        %1021 = vmatprep.subr.bf16.mxu0 0
        %1022 = vmatpush1.bf16.msra.mxu0 %v979
        %1023 = vmatprep.subr.bf16.mxu0 0
        %1024 = vmatpush1.bf16.msra.mxu0 %v997
        %1025 = vmatprep.subr.bf16.mxu0 0
        %1026 = vmatpush1.bf16.msra.mxu0 0
        %1027 = vmatprep.subr.bf16.mxu0 0
        %1028 = vmatpush1.bf16.msra.mxu0 0
        %1029 = vmatprep.subr.bf16.mxu0 0
        %1030 = vmatpush1.bf16.msra.mxu0 0
        %1031 = vmatprep.mubr.bf16.mxu0 %v994
        %1032 = vmatmul.mubr.bf16.gmra.mrb[0].mxu0 %v890
        %v1033 = vpop.f32.mrb[0].mxu0
        %v1034 = vadd.f32 0.0, %v1033
        %v1035 = vpop.f32.mrb[0].mxu0
        %v1036 = vpop.f32.mrb[0].mxu0
        %v1037 = vpop.f32.mrb[0].mxu0
        %1038 = vdwg.mxu0
        %v1039 = vadd.f32 %v876, %v1034
        %s1040 = scalar_lea.vmem [#allocation2], 4
        %v1041 = vld [vmem:[%s1040] ss:$8 sm:$0x3]
        %v1043 = vlaneseq
        %v1044 = vshrl.u32 %v1043, 7
        %v1045 = vsub.s32 0, %v1044
        %v1046 = vrot.slane %v1041, %v1045
        %v1047 = vlaneseq
        %v1048 = vshrl.u32 %v1047, 7
        %v1049 = vsub.s32 1, %v1048
        %v1050 = vrot.slane %v1041, %v1049
        %v1053 = vpack.c.bf16 %v1046, %v1046
        %v1054 = vpack.c.bf16 %v1050, %v1050
        %s1055 = scalar_lea.vmem %s3, 400
        %v1056 = vld [vmem:[%s1055] sm:$0xf]
        %v1057 = vld [vmem:[%s1055 + $0x4] sm:$0xf]
        %v1058 = vld [vmem:[%s1055 + $0x8] sm:$0xf]
        %v1059 = vld [vmem:[%s1055 + $0xc] sm:$0xf]
        %v1060 = vld [vmem:[%s1055 + $0x10] sm:$0xf]
        %v1061 = vld [vmem:[%s1055 + $0x14] sm:$0xf]
        %v1062 = vld [vmem:[%s1055 + $0x18] sm:$0xf]
        %v1063 = vld [vmem:[%s1055 + $0x1c] sm:$0xf]
        %v1064 = vld [vmem:[%s1055 + $0x20] sm:$0xf]
        %v1065 = vld [vmem:[%s1055 + $0x24] sm:$0xf]
        %v1066 = vld [vmem:[%s1055 + $0x28] sm:$0xf]
        %v1067 = vld [vmem:[%s1055 + $0x2c] sm:$0xf]
        %v1068 = vld [vmem:[%s1055 + $0x30] sm:$0xf]
        %v1069 = vld [vmem:[%s1055 + $0x34] sm:$0xf]
        %v1070 = vld [vmem:[%s1055 + $0x38] sm:$0xf]
        %v1071 = vld [vmem:[%s1055 + $0x3c] sm:$0xf]
        %v1072 = vld [vmem:[%s1055 + $0x40] sm:$0xf]
        %v1073 = vld [vmem:[%s1055 + $0x44] sm:$0xf]
        %v1074 = vld [vmem:[%s1055 + $0x48] sm:$0xf]
        %v1075 = vld [vmem:[%s1055 + $0x4c] sm:$0xf]
        %v1076 = vld [vmem:[%s1055 + $0x50] sm:$0xf]
        %v1077 = vld [vmem:[%s1055 + $0x54] sm:$0xf]
        %v1078 = vld [vmem:[%s1055 + $0x58] sm:$0xf]
        %v1079 = vld [vmem:[%s1055 + $0x5c] sm:$0xf]
        %v1080 = vld [vmem:[%s1055 + $0x60] sm:$0x3]
        %v1106 = vunpack.c.l.b16 %v1056
        %v1107 = vunpack.c.l.b16 %v1057
        %v1108 = vunpack.c.l.b16 %v1058
        %v1109 = vunpack.c.l.b16 %v1059
        %v1110 = vunpack.c.l.b16 %v1060
        %v1111 = vunpack.c.l.b16 %v1061
        %v1112 = vunpack.c.l.b16 %v1062
        %v1113 = vunpack.c.l.b16 %v1063
        %v1114 = vunpack.c.l.b16 %v1064
        %v1115 = vunpack.c.l.b16 %v1065
        %v1116 = vunpack.c.l.b16 %v1066
        %v1117 = vunpack.c.l.b16 %v1067
        %v1118 = vunpack.c.l.b16 %v1068
        %v1119 = vunpack.c.l.b16 %v1069
        %v1120 = vunpack.c.l.b16 %v1070
        %v1121 = vunpack.c.l.b16 %v1071
        %v1122 = vunpack.c.l.b16 %v1072
        %v1123 = vunpack.c.l.b16 %v1073
        %v1124 = vunpack.c.l.b16 %v1074
        %v1125 = vunpack.c.l.b16 %v1075
        %v1126 = vunpack.c.l.b16 %v1076
        %v1127 = vunpack.c.l.b16 %v1077
        %v1128 = vunpack.c.l.b16 %v1078
        %v1129 = vunpack.c.l.b16 %v1079
        %v1130 = vunpack.c.l.b16 %v1080
        %v1131 = vpack.c.b16 %v1107, %v1106
        %v1132 = vpack.c.b16 %v1109, %v1108
        %v1133 = vpack.c.b16 %v1111, %v1110
        %v1134 = vpack.c.b16 %v1113, %v1112
        %v1135 = vpack.c.b16 %v1115, %v1114
        %v1136 = vpack.c.b16 %v1117, %v1116
        %v1137 = vpack.c.b16 %v1119, %v1118
        %v1138 = vpack.c.b16 %v1121, %v1120
        %v1139 = vpack.c.b16 %v1123, %v1122
        %v1140 = vpack.c.b16 %v1125, %v1124
        %v1141 = vpack.c.b16 %v1127, %v1126
        %v1142 = vpack.c.b16 %v1129, %v1128
        %v1143 = vpack.c.b16 %v1130, %v1130
        %v1157 = vsel %vm385, %v1054, 0
        %v1160 = vsel %vm330, %v1143, 0
        %1162 = vmatprep.subr.bf16.mxu0 0
        %1163 = vmatpush1.bf16.msra.mxu0 %v1131
        %1164 = vmatprep.subr.bf16.mxu0 0
        %1165 = vmatpush1.bf16.msra.mxu0 %v1132
        %1166 = vmatprep.subr.bf16.mxu0 0
        %1167 = vmatpush1.bf16.msra.mxu0 %v1133
        %1168 = vmatprep.subr.bf16.mxu0 0
        %1169 = vmatpush1.bf16.msra.mxu0 %v1134
        %1170 = vmatprep.subr.bf16.mxu0 0
        %1171 = vmatpush1.bf16.msra.mxu0 %v1135
        %1172 = vmatprep.subr.bf16.mxu0 0
        %1173 = vmatpush1.bf16.msra.mxu0 %v1136
        %1174 = vmatprep.subr.bf16.mxu0 0
        %1175 = vmatpush1.bf16.msra.mxu0 %v1137
        %1176 = vmatprep.subr.bf16.mxu0 0
        %1177 = vmatpush1.bf16.msra.mxu0 %v1138
        %1178 = vmatprep.subr.bf16.mxu0 0
        %1179 = vmatpush1.bf16.msra.mxu0 %v1139
        %1180 = vmatprep.subr.bf16.mxu0 0
        %1181 = vmatpush1.bf16.msra.mxu0 %v1140
        %1182 = vmatprep.subr.bf16.mxu0 0
        %1183 = vmatpush1.bf16.msra.mxu0 %v1141
        %1184 = vmatprep.subr.bf16.mxu0 0
        %1185 = vmatpush1.bf16.msra.mxu0 %v1142
        %1186 = vmatprep.subr.bf16.mxu0 0
        %1187 = vmatpush1.bf16.msra.mxu0 %v1160
        %1188 = vmatprep.subr.bf16.mxu0 0
        %1189 = vmatpush1.bf16.msra.mxu0 0
        %1190 = vmatprep.subr.bf16.mxu0 0
        %1191 = vmatpush1.bf16.msra.mxu0 0
        %1192 = vmatprep.subr.bf16.mxu0 0
        %1193 = vmatpush1.bf16.msra.mxu0 0
        %1194 = vmatprep.mubr.bf16.mxu0 %v1157
        %1195 = vmatmul.mubr.bf16.gmra.mrb[0].mxu0 %v1053
        %v1196 = vpop.f32.mrb[0].mxu0
        %v1197 = vadd.f32 0.0, %v1196
        %v1198 = vpop.f32.mrb[0].mxu0
        %v1199 = vpop.f32.mrb[0].mxu0
        %v1200 = vpop.f32.mrb[0].mxu0
        %1201 = vdwg.mxu0
        %v1202 = vadd.f32 %v1039, %v1197
        %s1203 = scalar_lea.vmem [#allocation2], 5
        %v1204 = vld [vmem:[%s1203] ss:$8 sm:$0x3]
        %v1206 = vlaneseq
        %v1207 = vshrl.u32 %v1206, 7
        %v1208 = vsub.s32 0, %v1207
        %v1209 = vrot.slane %v1204, %v1208
        %v1210 = vlaneseq
        %v1211 = vshrl.u32 %v1210, 7
        %v1212 = vsub.s32 1, %v1211
        %v1213 = vrot.slane %v1204, %v1212
        %v1216 = vpack.c.bf16 %v1209, %v1209
        %v1217 = vpack.c.bf16 %v1213, %v1213
        %s1218 = scalar_lea.vmem %s3, 500
        %v1219 = vld [vmem:[%s1218] sm:$0xf]
        %v1220 = vld [vmem:[%s1218 + $0x4] sm:$0xf]
        %v1221 = vld [vmem:[%s1218 + $0x8] sm:$0xf]
        %v1222 = vld [vmem:[%s1218 + $0xc] sm:$0xf]
        %v1223 = vld [vmem:[%s1218 + $0x10] sm:$0xf]
        %v1224 = vld [vmem:[%s1218 + $0x14] sm:$0xf]
        %v1225 = vld [vmem:[%s1218 + $0x18] sm:$0xf]
        %v1226 = vld [vmem:[%s1218 + $0x1c] sm:$0xf]
        %v1227 = vld [vmem:[%s1218 + $0x20] sm:$0xf]
        %v1228 = vld [vmem:[%s1218 + $0x24] sm:$0xf]
        %v1229 = vld [vmem:[%s1218 + $0x28] sm:$0xf]
        %v1230 = vld [vmem:[%s1218 + $0x2c] sm:$0xf]
        %v1231 = vld [vmem:[%s1218 + $0x30] sm:$0xf]
        %v1232 = vld [vmem:[%s1218 + $0x34] sm:$0xf]
        %v1233 = vld [vmem:[%s1218 + $0x38] sm:$0xf]
        %v1234 = vld [vmem:[%s1218 + $0x3c] sm:$0xf]
        %v1235 = vld [vmem:[%s1218 + $0x40] sm:$0xf]
        %v1236 = vld [vmem:[%s1218 + $0x44] sm:$0xf]
        %v1237 = vld [vmem:[%s1218 + $0x48] sm:$0xf]
        %v1238 = vld [vmem:[%s1218 + $0x4c] sm:$0xf]
        %v1239 = vld [vmem:[%s1218 + $0x50] sm:$0xf]
        %v1240 = vld [vmem:[%s1218 + $0x54] sm:$0xf]
        %v1241 = vld [vmem:[%s1218 + $0x58] sm:$0xf]
        %v1242 = vld [vmem:[%s1218 + $0x5c] sm:$0xf]
        %v1243 = vld [vmem:[%s1218 + $0x60] sm:$0x3]
        %v1269 = vunpack.c.l.b16 %v1219
        %v1270 = vunpack.c.l.b16 %v1220
        %v1271 = vunpack.c.l.b16 %v1221
        %v1272 = vunpack.c.l.b16 %v1222
        %v1273 = vunpack.c.l.b16 %v1223
        %v1274 = vunpack.c.l.b16 %v1224
        %v1275 = vunpack.c.l.b16 %v1225
        %v1276 = vunpack.c.l.b16 %v1226
        %v1277 = vunpack.c.l.b16 %v1227
        %v1278 = vunpack.c.l.b16 %v1228
        %v1279 = vunpack.c.l.b16 %v1229
        %v1280 = vunpack.c.l.b16 %v1230
        %v1281 = vunpack.c.l.b16 %v1231
        %v1282 = vunpack.c.l.b16 %v1232
        %v1283 = vunpack.c.l.b16 %v1233
        %v1284 = vunpack.c.l.b16 %v1234
        %v1285 = vunpack.c.l.b16 %v1235
        %v1286 = vunpack.c.l.b16 %v1236
        %v1287 = vunpack.c.l.b16 %v1237
        %v1288 = vunpack.c.l.b16 %v1238
        %v1289 = vunpack.c.l.b16 %v1239
        %v1290 = vunpack.c.l.b16 %v1240
        %v1291 = vunpack.c.l.b16 %v1241
        %v1292 = vunpack.c.l.b16 %v1242
        %v1293 = vunpack.c.l.b16 %v1243
        %v1294 = vpack.c.b16 %v1270, %v1269
        %v1295 = vpack.c.b16 %v1272, %v1271
        %v1296 = vpack.c.b16 %v1274, %v1273
        %v1297 = vpack.c.b16 %v1276, %v1275
        %v1298 = vpack.c.b16 %v1278, %v1277
        %v1299 = vpack.c.b16 %v1280, %v1279
        %v1300 = vpack.c.b16 %v1282, %v1281
        %v1301 = vpack.c.b16 %v1284, %v1283
        %v1302 = vpack.c.b16 %v1286, %v1285
        %v1303 = vpack.c.b16 %v1288, %v1287
        %v1304 = vpack.c.b16 %v1290, %v1289
        %v1305 = vpack.c.b16 %v1292, %v1291
        %v1306 = vpack.c.b16 %v1293, %v1293
        %v1320 = vsel %vm385, %v1217, 0
        %v1323 = vsel %vm330, %v1306, 0
        %1325 = vmatprep.subr.bf16.mxu0 0
        %1326 = vmatpush1.bf16.msra.mxu0 %v1294
        %1327 = vmatprep.subr.bf16.mxu0 0
        %1328 = vmatpush1.bf16.msra.mxu0 %v1295
        %1329 = vmatprep.subr.bf16.mxu0 0
        %1330 = vmatpush1.bf16.msra.mxu0 %v1296
        %1331 = vmatprep.subr.bf16.mxu0 0
        %1332 = vmatpush1.bf16.msra.mxu0 %v1297
        %1333 = vmatprep.subr.bf16.mxu0 0
        %1334 = vmatpush1.bf16.msra.mxu0 %v1298
        %1335 = vmatprep.subr.bf16.mxu0 0
        %1336 = vmatpush1.bf16.msra.mxu0 %v1299
        %1337 = vmatprep.subr.bf16.mxu0 0
        %1338 = vmatpush1.bf16.msra.mxu0 %v1300
        %1339 = vmatprep.subr.bf16.mxu0 0
        %1340 = vmatpush1.bf16.msra.mxu0 %v1301
        %1341 = vmatprep.subr.bf16.mxu0 0
        %1342 = vmatpush1.bf16.msra.mxu0 %v1302
        %1343 = vmatprep.subr.bf16.mxu0 0
        %1344 = vmatpush1.bf16.msra.mxu0 %v1303
        %1345 = vmatprep.subr.bf16.mxu0 0
        %1346 = vmatpush1.bf16.msra.mxu0 %v1304
        %1347 = vmatprep.subr.bf16.mxu0 0
        %1348 = vmatpush1.bf16.msra.mxu0 %v1305
        %1349 = vmatprep.subr.bf16.mxu0 0
        %1350 = vmatpush1.bf16.msra.mxu0 %v1323
        %1351 = vmatprep.subr.bf16.mxu0 0
        %1352 = vmatpush1.bf16.msra.mxu0 0
        %1353 = vmatprep.subr.bf16.mxu0 0
        %1354 = vmatpush1.bf16.msra.mxu0 0
        %1355 = vmatprep.subr.bf16.mxu0 0
        %1356 = vmatpush1.bf16.msra.mxu0 0
        %1357 = vmatprep.mubr.bf16.mxu0 %v1320
        %1358 = vmatmul.mubr.bf16.gmra.mrb[0].mxu0 %v1216
        %v1359 = vpop.f32.mrb[0].mxu0
        %v1360 = vadd.f32 0.0, %v1359
        %v1361 = vpop.f32.mrb[0].mxu0
        %v1362 = vpop.f32.mrb[0].mxu0
        %v1363 = vpop.f32.mrb[0].mxu0
        %1364 = vdwg.mxu0
        %v1365 = vadd.f32 %v1202, %v1360
        %s1366 = scalar_lea.vmem [#allocation2], 6
        %v1367 = vld [vmem:[%s1366] ss:$8 sm:$0x3]
        %v1369 = vlaneseq
        %v1370 = vshrl.u32 %v1369, 7
        %v1371 = vsub.s32 0, %v1370
        %v1372 = vrot.slane %v1367, %v1371
        %v1373 = vlaneseq
        %v1374 = vshrl.u32 %v1373, 7
        %v1375 = vsub.s32 1, %v1374
        %v1376 = vrot.slane %v1367, %v1375
        %v1379 = vpack.c.bf16 %v1372, %v1372
        %v1380 = vpack.c.bf16 %v1376, %v1376
        %s1381 = scalar_lea.vmem %s3, 600
        %v1382 = vld [vmem:[%s1381] sm:$0xf]
        %v1383 = vld [vmem:[%s1381 + $0x4] sm:$0xf]
        %v1384 = vld [vmem:[%s1381 + $0x8] sm:$0xf]
        %v1385 = vld [vmem:[%s1381 + $0xc] sm:$0xf]
        %v1386 = vld [vmem:[%s1381 + $0x10] sm:$0xf]
        %v1387 = vld [vmem:[%s1381 + $0x14] sm:$0xf]
        %v1388 = vld [vmem:[%s1381 + $0x18] sm:$0xf]
        %v1389 = vld [vmem:[%s1381 + $0x1c] sm:$0xf]
        %v1390 = vld [vmem:[%s1381 + $0x20] sm:$0xf]
        %v1391 = vld [vmem:[%s1381 + $0x24] sm:$0xf]
        %v1392 = vld [vmem:[%s1381 + $0x28] sm:$0xf]
        %v1393 = vld [vmem:[%s1381 + $0x2c] sm:$0xf]
        %v1394 = vld [vmem:[%s1381 + $0x30] sm:$0xf]
        %v1395 = vld [vmem:[%s1381 + $0x34] sm:$0xf]
        %v1396 = vld [vmem:[%s1381 + $0x38] sm:$0xf]
        %v1397 = vld [vmem:[%s1381 + $0x3c] sm:$0xf]
        %v1398 = vld [vmem:[%s1381 + $0x40] sm:$0xf]
        %v1399 = vld [vmem:[%s1381 + $0x44] sm:$0xf]
        %v1400 = vld [vmem:[%s1381 + $0x48] sm:$0xf]
        %v1401 = vld [vmem:[%s1381 + $0x4c] sm:$0xf]
        %v1402 = vld [vmem:[%s1381 + $0x50] sm:$0xf]
        %v1403 = vld [vmem:[%s1381 + $0x54] sm:$0xf]
        %v1404 = vld [vmem:[%s1381 + $0x58] sm:$0xf]
        %v1405 = vld [vmem:[%s1381 + $0x5c] sm:$0xf]
        %v1406 = vld [vmem:[%s1381 + $0x60] sm:$0x3]
        %v1432 = vunpack.c.l.b16 %v1382
        %v1433 = vunpack.c.l.b16 %v1383
        %v1434 = vunpack.c.l.b16 %v1384
        %v1435 = vunpack.c.l.b16 %v1385
        %v1436 = vunpack.c.l.b16 %v1386
        %v1437 = vunpack.c.l.b16 %v1387
        %v1438 = vunpack.c.l.b16 %v1388
        %v1439 = vunpack.c.l.b16 %v1389
        %v1440 = vunpack.c.l.b16 %v1390
        %v1441 = vunpack.c.l.b16 %v1391
        %v1442 = vunpack.c.l.b16 %v1392
        %v1443 = vunpack.c.l.b16 %v1393
        %v1444 = vunpack.c.l.b16 %v1394
        %v1445 = vunpack.c.l.b16 %v1395
        %v1446 = vunpack.c.l.b16 %v1396
        %v1447 = vunpack.c.l.b16 %v1397
        %v1448 = vunpack.c.l.b16 %v1398
        %v1449 = vunpack.c.l.b16 %v1399
        %v1450 = vunpack.c.l.b16 %v1400
        %v1451 = vunpack.c.l.b16 %v1401
        %v1452 = vunpack.c.l.b16 %v1402
        %v1453 = vunpack.c.l.b16 %v1403
        %v1454 = vunpack.c.l.b16 %v1404
        %v1455 = vunpack.c.l.b16 %v1405
        %v1456 = vunpack.c.l.b16 %v1406
        %v1457 = vpack.c.b16 %v1433, %v1432
        %v1458 = vpack.c.b16 %v1435, %v1434
        %v1459 = vpack.c.b16 %v1437, %v1436
        %v1460 = vpack.c.b16 %v1439, %v1438
        %v1461 = vpack.c.b16 %v1441, %v1440
        %v1462 = vpack.c.b16 %v1443, %v1442
        %v1463 = vpack.c.b16 %v1445, %v1444
        %v1464 = vpack.c.b16 %v1447, %v1446
        %v1465 = vpack.c.b16 %v1449, %v1448
        %v1466 = vpack.c.b16 %v1451, %v1450
        %v1467 = vpack.c.b16 %v1453, %v1452
        %v1468 = vpack.c.b16 %v1455, %v1454
        %v1469 = vpack.c.b16 %v1456, %v1456
        %v1483 = vsel %vm385, %v1380, 0
        %v1486 = vsel %vm330, %v1469, 0
        %1488 = vmatprep.subr.bf16.mxu0 0
        %1489 = vmatpush1.bf16.msra.mxu0 %v1457
        %1490 = vmatprep.subr.bf16.mxu0 0
        %1491 = vmatpush1.bf16.msra.mxu0 %v1458
        %1492 = vmatprep.subr.bf16.mxu0 0
        %1493 = vmatpush1.bf16.msra.mxu0 %v1459
        %1494 = vmatprep.subr.bf16.mxu0 0
        %1495 = vmatpush1.bf16.msra.mxu0 %v1460
        %1496 = vmatprep.subr.bf16.mxu0 0
        %1497 = vmatpush1.bf16.msra.mxu0 %v1461
        %1498 = vmatprep.subr.bf16.mxu0 0
        %1499 = vmatpush1.bf16.msra.mxu0 %v1462
        %1500 = vmatprep.subr.bf16.mxu0 0
        %1501 = vmatpush1.bf16.msra.mxu0 %v1463
        %1502 = vmatprep.subr.bf16.mxu0 0
        %1503 = vmatpush1.bf16.msra.mxu0 %v1464
        %1504 = vmatprep.subr.bf16.mxu0 0
        %1505 = vmatpush1.bf16.msra.mxu0 %v1465
        %1506 = vmatprep.subr.bf16.mxu0 0
        %1507 = vmatpush1.bf16.msra.mxu0 %v1466
        %1508 = vmatprep.subr.bf16.mxu0 0
        %1509 = vmatpush1.bf16.msra.mxu0 %v1467
        %1510 = vmatprep.subr.bf16.mxu0 0
        %1511 = vmatpush1.bf16.msra.mxu0 %v1468
        %1512 = vmatprep.subr.bf16.mxu0 0
        %1513 = vmatpush1.bf16.msra.mxu0 %v1486
        %1514 = vmatprep.subr.bf16.mxu0 0
        %1515 = vmatpush1.bf16.msra.mxu0 0
        %1516 = vmatprep.subr.bf16.mxu0 0
        %1517 = vmatpush1.bf16.msra.mxu0 0
        %1518 = vmatprep.subr.bf16.mxu0 0
        %1519 = vmatpush1.bf16.msra.mxu0 0
        %1520 = vmatprep.mubr.bf16.mxu0 %v1483
        %1521 = vmatmul.mubr.bf16.gmra.mrb[0].mxu0 %v1379
        %v1522 = vpop.f32.mrb[0].mxu0
        %v1523 = vadd.f32 0.0, %v1522
        %v1524 = vpop.f32.mrb[0].mxu0
        %v1525 = vpop.f32.mrb[0].mxu0
        %v1526 = vpop.f32.mrb[0].mxu0
        %1527 = vdwg.mxu0
        %v1528 = vadd.f32 %v1365, %v1523
        %s1529 = scalar_lea.vmem [#allocation2], 7
        %v1530 = vld [vmem:[%s1529] ss:$8 sm:$0x3]
        %v1532 = vlaneseq
        %v1533 = vshrl.u32 %v1532, 7
        %v1534 = vsub.s32 0, %v1533
        %v1535 = vrot.slane %v1530, %v1534
        %v1536 = vlaneseq
        %v1537 = vshrl.u32 %v1536, 7
        %v1538 = vsub.s32 1, %v1537
        %v1539 = vrot.slane %v1530, %v1538
        %v1542 = vpack.c.bf16 %v1535, %v1535
        %v1543 = vpack.c.bf16 %v1539, %v1539
        %s1544 = scalar_lea.vmem %s3, 700
        %v1545 = vld [vmem:[%s1544] sm:$0xf]
        %v1546 = vld [vmem:[%s1544 + $0x4] sm:$0xf]
        %v1547 = vld [vmem:[%s1544 + $0x8] sm:$0xf]
        %v1548 = vld [vmem:[%s1544 + $0xc] sm:$0xf]
        %v1549 = vld [vmem:[%s1544 + $0x10] sm:$0xf]
        %v1550 = vld [vmem:[%s1544 + $0x14] sm:$0xf]
        %v1551 = vld [vmem:[%s1544 + $0x18] sm:$0xf]
        %v1552 = vld [vmem:[%s1544 + $0x1c] sm:$0xf]
        %v1553 = vld [vmem:[%s1544 + $0x20] sm:$0xf]
        %v1554 = vld [vmem:[%s1544 + $0x24] sm:$0xf]
        %v1555 = vld [vmem:[%s1544 + $0x28] sm:$0xf]
        %v1556 = vld [vmem:[%s1544 + $0x2c] sm:$0xf]
        %v1557 = vld [vmem:[%s1544 + $0x30] sm:$0xf]
        %v1558 = vld [vmem:[%s1544 + $0x34] sm:$0xf]
        %v1559 = vld [vmem:[%s1544 + $0x38] sm:$0xf]
        %v1560 = vld [vmem:[%s1544 + $0x3c] sm:$0xf]
        %v1561 = vld [vmem:[%s1544 + $0x40] sm:$0xf]
        %v1562 = vld [vmem:[%s1544 + $0x44] sm:$0xf]
        %v1563 = vld [vmem:[%s1544 + $0x48] sm:$0xf]
        %v1564 = vld [vmem:[%s1544 + $0x4c] sm:$0xf]
        %v1565 = vld [vmem:[%s1544 + $0x50] sm:$0xf]
        %v1566 = vld [vmem:[%s1544 + $0x54] sm:$0xf]
        %v1567 = vld [vmem:[%s1544 + $0x58] sm:$0xf]
        %v1568 = vld [vmem:[%s1544 + $0x5c] sm:$0xf]
        %v1569 = vld [vmem:[%s1544 + $0x60] sm:$0x3]
        %v1595 = vunpack.c.l.b16 %v1545
        %v1596 = vunpack.c.l.b16 %v1546
        %v1597 = vunpack.c.l.b16 %v1547
        %v1598 = vunpack.c.l.b16 %v1548
        %v1599 = vunpack.c.l.b16 %v1549
        %v1600 = vunpack.c.l.b16 %v1550
        %v1601 = vunpack.c.l.b16 %v1551
        %v1602 = vunpack.c.l.b16 %v1552
        %v1603 = vunpack.c.l.b16 %v1553
        %v1604 = vunpack.c.l.b16 %v1554
        %v1605 = vunpack.c.l.b16 %v1555
        %v1606 = vunpack.c.l.b16 %v1556
        %v1607 = vunpack.c.l.b16 %v1557
        %v1608 = vunpack.c.l.b16 %v1558
        %v1609 = vunpack.c.l.b16 %v1559
        %v1610 = vunpack.c.l.b16 %v1560
        %v1611 = vunpack.c.l.b16 %v1561
        %v1612 = vunpack.c.l.b16 %v1562
        %v1613 = vunpack.c.l.b16 %v1563
        %v1614 = vunpack.c.l.b16 %v1564
        %v1615 = vunpack.c.l.b16 %v1565
        %v1616 = vunpack.c.l.b16 %v1566
        %v1617 = vunpack.c.l.b16 %v1567
        %v1618 = vunpack.c.l.b16 %v1568
        %v1619 = vunpack.c.l.b16 %v1569
        %v1620 = vpack.c.b16 %v1596, %v1595
        %v1621 = vpack.c.b16 %v1598, %v1597
        %v1622 = vpack.c.b16 %v1600, %v1599
        %v1623 = vpack.c.b16 %v1602, %v1601
        %v1624 = vpack.c.b16 %v1604, %v1603
        %v1625 = vpack.c.b16 %v1606, %v1605
        %v1626 = vpack.c.b16 %v1608, %v1607
        %v1627 = vpack.c.b16 %v1610, %v1609
        %v1628 = vpack.c.b16 %v1612, %v1611
        %v1629 = vpack.c.b16 %v1614, %v1613
        %v1630 = vpack.c.b16 %v1616, %v1615
        %v1631 = vpack.c.b16 %v1618, %v1617
        %v1632 = vpack.c.b16 %v1619, %v1619
        %v1646 = vsel %vm385, %v1543, 0
        %v1649 = vsel %vm330, %v1632, 0
        %1651 = vmatprep.subr.bf16.mxu0 0
        %1652 = vmatpush1.bf16.msra.mxu0 %v1620
        %1653 = vmatprep.subr.bf16.mxu0 0
        %1654 = vmatpush1.bf16.msra.mxu0 %v1621
        %1655 = vmatprep.subr.bf16.mxu0 0
        %1656 = vmatpush1.bf16.msra.mxu0 %v1622
        %1657 = vmatprep.subr.bf16.mxu0 0
        %1658 = vmatpush1.bf16.msra.mxu0 %v1623
        %1659 = vmatprep.subr.bf16.mxu0 0
        %1660 = vmatpush1.bf16.msra.mxu0 %v1624
        %1661 = vmatprep.subr.bf16.mxu0 0
        %1662 = vmatpush1.bf16.msra.mxu0 %v1625
        %1663 = vmatprep.subr.bf16.mxu0 0
        %1664 = vmatpush1.bf16.msra.mxu0 %v1626
        %1665 = vmatprep.subr.bf16.mxu0 0
        %1666 = vmatpush1.bf16.msra.mxu0 %v1627
        %1667 = vmatprep.subr.bf16.mxu0 0
        %1668 = vmatpush1.bf16.msra.mxu0 %v1628
        %1669 = vmatprep.subr.bf16.mxu0 0
        %1670 = vmatpush1.bf16.msra.mxu0 %v1629
        %1671 = vmatprep.subr.bf16.mxu0 0
        %1672 = vmatpush1.bf16.msra.mxu0 %v1630
        %1673 = vmatprep.subr.bf16.mxu0 0
        %1674 = vmatpush1.bf16.msra.mxu0 %v1631
        %1675 = vmatprep.subr.bf16.mxu0 0
        %1676 = vmatpush1.bf16.msra.mxu0 %v1649
        %1677 = vmatprep.subr.bf16.mxu0 0
        %1678 = vmatpush1.bf16.msra.mxu0 0
        %1679 = vmatprep.subr.bf16.mxu0 0
        %1680 = vmatpush1.bf16.msra.mxu0 0
        %1681 = vmatprep.subr.bf16.mxu0 0
        %1682 = vmatpush1.bf16.msra.mxu0 0
        %1683 = vmatprep.mubr.bf16.mxu0 %v1646
        %1684 = vmatmul.mubr.bf16.gmra.mrb[0].mxu0 %v1542
        %v1685 = vpop.f32.mrb[0].mxu0
        %v1686 = vadd.f32 0.0, %v1685
        %v1687 = vpop.f32.mrb[0].mxu0
        %v1688 = vpop.f32.mrb[0].mxu0
        %v1689 = vpop.f32.mrb[0].mxu0
        %1690 = vdwg.mxu0
        %v1691 = vadd.f32 %v1528, %v1686
        %s1692 = scalar_lea.vmem [#allocation2], 16
        %v1693 = vld [vmem:[%s1692] ss:$8 sm:$0x3]
        %v1695 = vlaneseq
        %v1696 = vshrl.u32 %v1695, 7
        %v1697 = vsub.s32 0, %v1696
        %v1698 = vrot.slane %v1693, %v1697
        %v1699 = vlaneseq
        %v1700 = vshrl.u32 %v1699, 7
        %v1701 = vsub.s32 1, %v1700
        %v1702 = vrot.slane %v1693, %v1701
        %v1705 = vpack.c.bf16 %v1698, %v1698
        %v1706 = vpack.c.bf16 %v1702, %v1702
        %s1707 = scalar_lea.vmem %s3, 800
        %v1708 = vld [vmem:[%s1707] sm:$0xf]
        %v1709 = vld [vmem:[%s1707 + $0x4] sm:$0xf]
        %v1710 = vld [vmem:[%s1707 + $0x8] sm:$0xf]
        %v1711 = vld [vmem:[%s1707 + $0xc] sm:$0xf]
        %v1712 = vld [vmem:[%s1707 + $0x10] sm:$0xf]
        %v1713 = vld [vmem:[%s1707 + $0x14] sm:$0xf]
        %v1714 = vld [vmem:[%s1707 + $0x18] sm:$0xf]
        %v1715 = vld [vmem:[%s1707 + $0x1c] sm:$0xf]
        %v1716 = vld [vmem:[%s1707 + $0x20] sm:$0xf]
        %v1717 = vld [vmem:[%s1707 + $0x24] sm:$0xf]
        %v1718 = vld [vmem:[%s1707 + $0x28] sm:$0xf]
        %v1719 = vld [vmem:[%s1707 + $0x2c] sm:$0xf]
        %v1720 = vld [vmem:[%s1707 + $0x30] sm:$0xf]
        %v1721 = vld [vmem:[%s1707 + $0x34] sm:$0xf]
        %v1722 = vld [vmem:[%s1707 + $0x38] sm:$0xf]
        %v1723 = vld [vmem:[%s1707 + $0x3c] sm:$0xf]
        %v1724 = vld [vmem:[%s1707 + $0x40] sm:$0xf]
        %v1725 = vld [vmem:[%s1707 + $0x44] sm:$0xf]
        %v1726 = vld [vmem:[%s1707 + $0x48] sm:$0xf]
        %v1727 = vld [vmem:[%s1707 + $0x4c] sm:$0xf]
        %v1728 = vld [vmem:[%s1707 + $0x50] sm:$0xf]
        %v1729 = vld [vmem:[%s1707 + $0x54] sm:$0xf]
        %v1730 = vld [vmem:[%s1707 + $0x58] sm:$0xf]
        %v1731 = vld [vmem:[%s1707 + $0x5c] sm:$0xf]
        %v1732 = vld [vmem:[%s1707 + $0x60] sm:$0x3]
        %v1758 = vunpack.c.l.b16 %v1708
        %v1759 = vunpack.c.l.b16 %v1709
        %v1760 = vunpack.c.l.b16 %v1710
        %v1761 = vunpack.c.l.b16 %v1711
        %v1762 = vunpack.c.l.b16 %v1712
        %v1763 = vunpack.c.l.b16 %v1713
        %v1764 = vunpack.c.l.b16 %v1714
        %v1765 = vunpack.c.l.b16 %v1715
        %v1766 = vunpack.c.l.b16 %v1716
        %v1767 = vunpack.c.l.b16 %v1717
        %v1768 = vunpack.c.l.b16 %v1718
        %v1769 = vunpack.c.l.b16 %v1719
        %v1770 = vunpack.c.l.b16 %v1720
        %v1771 = vunpack.c.l.b16 %v1721
        %v1772 = vunpack.c.l.b16 %v1722
        %v1773 = vunpack.c.l.b16 %v1723
        %v1774 = vunpack.c.l.b16 %v1724
        %v1775 = vunpack.c.l.b16 %v1725
        %v1776 = vunpack.c.l.b16 %v1726
        %v1777 = vunpack.c.l.b16 %v1727
        %v1778 = vunpack.c.l.b16 %v1728
        %v1779 = vunpack.c.l.b16 %v1729
        %v1780 = vunpack.c.l.b16 %v1730
        %v1781 = vunpack.c.l.b16 %v1731
        %v1782 = vunpack.c.l.b16 %v1732
        %v1783 = vpack.c.b16 %v1759, %v1758
        %v1784 = vpack.c.b16 %v1761, %v1760
        %v1785 = vpack.c.b16 %v1763, %v1762
        %v1786 = vpack.c.b16 %v1765, %v1764
        %v1787 = vpack.c.b16 %v1767, %v1766
        %v1788 = vpack.c.b16 %v1769, %v1768
        %v1789 = vpack.c.b16 %v1771, %v1770
        %v1790 = vpack.c.b16 %v1773, %v1772
        %v1791 = vpack.c.b16 %v1775, %v1774
        %v1792 = vpack.c.b16 %v1777, %v1776
        %v1793 = vpack.c.b16 %v1779, %v1778
        %v1794 = vpack.c.b16 %v1781, %v1780
        %v1795 = vpack.c.b16 %v1782, %v1782
        %v1809 = vsel %vm385, %v1706, 0
        %v1812 = vsel %vm330, %v1795, 0
        %1814 = vmatprep.subr.bf16.mxu0 0
        %1815 = vmatpush1.bf16.msra.mxu0 %v1783
        %1816 = vmatprep.subr.bf16.mxu0 0
        %1817 = vmatpush1.bf16.msra.mxu0 %v1784
        %1818 = vmatprep.subr.bf16.mxu0 0
        %1819 = vmatpush1.bf16.msra.mxu0 %v1785
        %1820 = vmatprep.subr.bf16.mxu0 0
        %1821 = vmatpush1.bf16.msra.mxu0 %v1786
        %1822 = vmatprep.subr.bf16.mxu0 0
        %1823 = vmatpush1.bf16.msra.mxu0 %v1787
        %1824 = vmatprep.subr.bf16.mxu0 0
        %1825 = vmatpush1.bf16.msra.mxu0 %v1788
        %1826 = vmatprep.subr.bf16.mxu0 0
        %1827 = vmatpush1.bf16.msra.mxu0 %v1789
        %1828 = vmatprep.subr.bf16.mxu0 0
        %1829 = vmatpush1.bf16.msra.mxu0 %v1790
        %1830 = vmatprep.subr.bf16.mxu0 0
        %1831 = vmatpush1.bf16.msra.mxu0 %v1791
        %1832 = vmatprep.subr.bf16.mxu0 0
        %1833 = vmatpush1.bf16.msra.mxu0 %v1792
        %1834 = vmatprep.subr.bf16.mxu0 0
        %1835 = vmatpush1.bf16.msra.mxu0 %v1793
        %1836 = vmatprep.subr.bf16.mxu0 0
        %1837 = vmatpush1.bf16.msra.mxu0 %v1794
        %1838 = vmatprep.subr.bf16.mxu0 0
        %1839 = vmatpush1.bf16.msra.mxu0 %v1812
        %1840 = vmatprep.subr.bf16.mxu0 0
        %1841 = vmatpush1.bf16.msra.mxu0 0
        %1842 = vmatprep.subr.bf16.mxu0 0
        %1843 = vmatpush1.bf16.msra.mxu0 0
        %1844 = vmatprep.subr.bf16.mxu0 0
        %1845 = vmatpush1.bf16.msra.mxu0 0
        %1846 = vmatprep.mubr.bf16.mxu0 %v1809
        %1847 = vmatmul.mubr.bf16.gmra.mrb[0].mxu0 %v1705
        %v1848 = vpop.f32.mrb[0].mxu0
        %v1849 = vadd.f32 0.0, %v1848
        %v1850 = vpop.f32.mrb[0].mxu0
        %v1851 = vpop.f32.mrb[0].mxu0
        %v1852 = vpop.f32.mrb[0].mxu0
        %1853 = vdwg.mxu0
        %v1854 = vadd.f32 %v1691, %v1849
        %s1855 = scalar_lea.vmem [#allocation2], 17
        %v1856 = vld [vmem:[%s1855] ss:$8 sm:$0x3]
        %v1858 = vlaneseq
        %v1859 = vshrl.u32 %v1858, 7
        %v1860 = vsub.s32 0, %v1859
        %v1861 = vrot.slane %v1856, %v1860
        %v1862 = vlaneseq
        %v1863 = vshrl.u32 %v1862, 7
        %v1864 = vsub.s32 1, %v1863
        %v1865 = vrot.slane %v1856, %v1864
        %v1868 = vpack.c.bf16 %v1861, %v1861
        %v1869 = vpack.c.bf16 %v1865, %v1865
        %s1870 = scalar_lea.vmem %s3, 900
        %v1871 = vld [vmem:[%s1870] sm:$0xf]
        %v1872 = vld [vmem:[%s1870 + $0x4] sm:$0xf]
        %v1873 = vld [vmem:[%s1870 + $0x8] sm:$0xf]
        %v1874 = vld [vmem:[%s1870 + $0xc] sm:$0xf]
        %v1875 = vld [vmem:[%s1870 + $0x10] sm:$0xf]
        %v1876 = vld [vmem:[%s1870 + $0x14] sm:$0xf]
        %v1877 = vld [vmem:[%s1870 + $0x18] sm:$0xf]
        %v1878 = vld [vmem:[%s1870 + $0x1c] sm:$0xf]
        %v1879 = vld [vmem:[%s1870 + $0x20] sm:$0xf]
        %v1880 = vld [vmem:[%s1870 + $0x24] sm:$0xf]
        %v1881 = vld [vmem:[%s1870 + $0x28] sm:$0xf]
        %v1882 = vld [vmem:[%s1870 + $0x2c] sm:$0xf]
        %v1883 = vld [vmem:[%s1870 + $0x30] sm:$0xf]
        %v1884 = vld [vmem:[%s1870 + $0x34] sm:$0xf]
        %v1885 = vld [vmem:[%s1870 + $0x38] sm:$0xf]
        %v1886 = vld [vmem:[%s1870 + $0x3c] sm:$0xf]
        %v1887 = vld [vmem:[%s1870 + $0x40] sm:$0xf]
        %v1888 = vld [vmem:[%s1870 + $0x44] sm:$0xf]
        %v1889 = vld [vmem:[%s1870 + $0x48] sm:$0xf]
        %v1890 = vld [vmem:[%s1870 + $0x4c] sm:$0xf]
        %v1891 = vld [vmem:[%s1870 + $0x50] sm:$0xf]
        %v1892 = vld [vmem:[%s1870 + $0x54] sm:$0xf]
        %v1893 = vld [vmem:[%s1870 + $0x58] sm:$0xf]
        %v1894 = vld [vmem:[%s1870 + $0x5c] sm:$0xf]
        %v1895 = vld [vmem:[%s1870 + $0x60] sm:$0x3]
        %v1921 = vunpack.c.l.b16 %v1871
        %v1922 = vunpack.c.l.b16 %v1872
        %v1923 = vunpack.c.l.b16 %v1873
        %v1924 = vunpack.c.l.b16 %v1874
        %v1925 = vunpack.c.l.b16 %v1875
        %v1926 = vunpack.c.l.b16 %v1876
        %v1927 = vunpack.c.l.b16 %v1877
        %v1928 = vunpack.c.l.b16 %v1878
        %v1929 = vunpack.c.l.b16 %v1879
        %v1930 = vunpack.c.l.b16 %v1880
        %v1931 = vunpack.c.l.b16 %v1881
        %v1932 = vunpack.c.l.b16 %v1882
        %v1933 = vunpack.c.l.b16 %v1883
        %v1934 = vunpack.c.l.b16 %v1884
        %v1935 = vunpack.c.l.b16 %v1885
        %v1936 = vunpack.c.l.b16 %v1886
        %v1937 = vunpack.c.l.b16 %v1887
        %v1938 = vunpack.c.l.b16 %v1888
        %v1939 = vunpack.c.l.b16 %v1889
        %v1940 = vunpack.c.l.b16 %v1890
        %v1941 = vunpack.c.l.b16 %v1891
        %v1942 = vunpack.c.l.b16 %v1892
        %v1943 = vunpack.c.l.b16 %v1893
        %v1944 = vunpack.c.l.b16 %v1894
        %v1945 = vunpack.c.l.b16 %v1895
        %v1946 = vpack.c.b16 %v1922, %v1921
        %v1947 = vpack.c.b16 %v1924, %v1923
        %v1948 = vpack.c.b16 %v1926, %v1925
        %v1949 = vpack.c.b16 %v1928, %v1927
        %v1950 = vpack.c.b16 %v1930, %v1929
        %v1951 = vpack.c.b16 %v1932, %v1931
        %v1952 = vpack.c.b16 %v1934, %v1933
        %v1953 = vpack.c.b16 %v1936, %v1935
        %v1954 = vpack.c.b16 %v1938, %v1937
        %v1955 = vpack.c.b16 %v1940, %v1939
        %v1956 = vpack.c.b16 %v1942, %v1941
        %v1957 = vpack.c.b16 %v1944, %v1943
        %v1958 = vpack.c.b16 %v1945, %v1945
        %v1972 = vsel %vm385, %v1869, 0
        %v1975 = vsel %vm330, %v1958, 0
        %1977 = vmatprep.subr.bf16.mxu0 0
        %1978 = vmatpush1.bf16.msra.mxu0 %v1946
        %1979 = vmatprep.subr.bf16.mxu0 0
        %1980 = vmatpush1.bf16.msra.mxu0 %v1947
        %1981 = vmatprep.subr.bf16.mxu0 0
        %1982 = vmatpush1.bf16.msra.mxu0 %v1948
        %1983 = vmatprep.subr.bf16.mxu0 0
        %1984 = vmatpush1.bf16.msra.mxu0 %v1949
        %1985 = vmatprep.subr.bf16.mxu0 0
        %1986 = vmatpush1.bf16.msra.mxu0 %v1950
        %1987 = vmatprep.subr.bf16.mxu0 0
        %1988 = vmatpush1.bf16.msra.mxu0 %v1951
        %1989 = vmatprep.subr.bf16.mxu0 0
        %1990 = vmatpush1.bf16.msra.mxu0 %v1952
        %1991 = vmatprep.subr.bf16.mxu0 0
        %1992 = vmatpush1.bf16.msra.mxu0 %v1953
        %1993 = vmatprep.subr.bf16.mxu0 0
        %1994 = vmatpush1.bf16.msra.mxu0 %v1954
        %1995 = vmatprep.subr.bf16.mxu0 0
        %1996 = vmatpush1.bf16.msra.mxu0 %v1955
        %1997 = vmatprep.subr.bf16.mxu0 0
        %1998 = vmatpush1.bf16.msra.mxu0 %v1956
        %1999 = vmatprep.subr.bf16.mxu0 0
        %2000 = vmatpush1.bf16.msra.mxu0 %v1957
        %2001 = vmatprep.subr.bf16.mxu0 0
        %2002 = vmatpush1.bf16.msra.mxu0 %v1975
        %2003 = vmatprep.subr.bf16.mxu0 0
        %2004 = vmatpush1.bf16.msra.mxu0 0
        %2005 = vmatprep.subr.bf16.mxu0 0
        %2006 = vmatpush1.bf16.msra.mxu0 0
        %2007 = vmatprep.subr.bf16.mxu0 0
        %2008 = vmatpush1.bf16.msra.mxu0 0
        %2009 = vmatprep.mubr.bf16.mxu0 %v1972
        %2010 = vmatmul.mubr.bf16.gmra.mrb[0].mxu0 %v1868
        %v2011 = vpop.f32.mrb[0].mxu0
        %v2012 = vadd.f32 0.0, %v2011
        %v2013 = vpop.f32.mrb[0].mxu0
        %v2014 = vpop.f32.mrb[0].mxu0
        %v2015 = vpop.f32.mrb[0].mxu0
        %2016 = vdwg.mxu0
        %v2017 = vadd.f32 %v1854, %v2012
        %s2018 = scalar_lea.vmem [#allocation2], 18
        %v2019 = vld [vmem:[%s2018] ss:$8 sm:$0x3]
        %v2021 = vlaneseq
        %v2022 = vshrl.u32 %v2021, 7
        %v2023 = vsub.s32 0, %v2022
        %v2024 = vrot.slane %v2019, %v2023
        %v2025 = vlaneseq
        %v2026 = vshrl.u32 %v2025, 7
        %v2027 = vsub.s32 1, %v2026
        %v2028 = vrot.slane %v2019, %v2027
        %v2031 = vpack.c.bf16 %v2024, %v2024
        %v2032 = vpack.c.bf16 %v2028, %v2028
        %s2033 = scalar_lea.vmem %s3, 1000
        %v2034 = vld [vmem:[%s2033] sm:$0xf]
        %v2035 = vld [vmem:[%s2033 + $0x4] sm:$0xf]
        %v2036 = vld [vmem:[%s2033 + $0x8] sm:$0xf]
        %v2037 = vld [vmem:[%s2033 + $0xc] sm:$0xf]
        %v2038 = vld [vmem:[%s2033 + $0x10] sm:$0xf]
        %v2039 = vld [vmem:[%s2033 + $0x14] sm:$0xf]
        %v2040 = vld [vmem:[%s2033 + $0x18] sm:$0xf]
        %v2041 = vld [vmem:[%s2033 + $0x1c] sm:$0xf]
        %v2042 = vld [vmem:[%s2033 + $0x20] sm:$0xf]
        %v2043 = vld [vmem:[%s2033 + $0x24] sm:$0xf]
        %v2044 = vld [vmem:[%s2033 + $0x28] sm:$0xf]
        %v2045 = vld [vmem:[%s2033 + $0x2c] sm:$0xf]
        %v2046 = vld [vmem:[%s2033 + $0x30] sm:$0xf]
        %v2047 = vld [vmem:[%s2033 + $0x34] sm:$0xf]
        %v2048 = vld [vmem:[%s2033 + $0x38] sm:$0xf]
        %v2049 = vld [vmem:[%s2033 + $0x3c] sm:$0xf]
        %v2050 = vld [vmem:[%s2033 + $0x40] sm:$0xf]
        %v2051 = vld [vmem:[%s2033 + $0x44] sm:$0xf]
        %v2052 = vld [vmem:[%s2033 + $0x48] sm:$0xf]
        %v2053 = vld [vmem:[%s2033 + $0x4c] sm:$0xf]
        %v2054 = vld [vmem:[%s2033 + $0x50] sm:$0xf]
        %v2055 = vld [vmem:[%s2033 + $0x54] sm:$0xf]
        %v2056 = vld [vmem:[%s2033 + $0x58] sm:$0xf]
        %v2057 = vld [vmem:[%s2033 + $0x5c] sm:$0xf]
        %v2058 = vld [vmem:[%s2033 + $0x60] sm:$0x3]
        %v2084 = vunpack.c.l.b16 %v2034
        %v2085 = vunpack.c.l.b16 %v2035
        %v2086 = vunpack.c.l.b16 %v2036
        %v2087 = vunpack.c.l.b16 %v2037
        %v2088 = vunpack.c.l.b16 %v2038
        %v2089 = vunpack.c.l.b16 %v2039
        %v2090 = vunpack.c.l.b16 %v2040
        %v2091 = vunpack.c.l.b16 %v2041
        %v2092 = vunpack.c.l.b16 %v2042
        %v2093 = vunpack.c.l.b16 %v2043
        %v2094 = vunpack.c.l.b16 %v2044
        %v2095 = vunpack.c.l.b16 %v2045
        %v2096 = vunpack.c.l.b16 %v2046
        %v2097 = vunpack.c.l.b16 %v2047
        %v2098 = vunpack.c.l.b16 %v2048
        %v2099 = vunpack.c.l.b16 %v2049
        %v2100 = vunpack.c.l.b16 %v2050
        %v2101 = vunpack.c.l.b16 %v2051
        %v2102 = vunpack.c.l.b16 %v2052
        %v2103 = vunpack.c.l.b16 %v2053
        %v2104 = vunpack.c.l.b16 %v2054
        %v2105 = vunpack.c.l.b16 %v2055
        %v2106 = vunpack.c.l.b16 %v2056
        %v2107 = vunpack.c.l.b16 %v2057
        %v2108 = vunpack.c.l.b16 %v2058
        %v2109 = vpack.c.b16 %v2085, %v2084
        %v2110 = vpack.c.b16 %v2087, %v2086
        %v2111 = vpack.c.b16 %v2089, %v2088
        %v2112 = vpack.c.b16 %v2091, %v2090
        %v2113 = vpack.c.b16 %v2093, %v2092
        %v2114 = vpack.c.b16 %v2095, %v2094
        %v2115 = vpack.c.b16 %v2097, %v2096
        %v2116 = vpack.c.b16 %v2099, %v2098
        %v2117 = vpack.c.b16 %v2101, %v2100
        %v2118 = vpack.c.b16 %v2103, %v2102
        %v2119 = vpack.c.b16 %v2105, %v2104
        %v2120 = vpack.c.b16 %v2107, %v2106
        %v2121 = vpack.c.b16 %v2108, %v2108
        %v2135 = vsel %vm385, %v2032, 0
        %v2138 = vsel %vm330, %v2121, 0
        %2140 = vmatprep.subr.bf16.mxu0 0
        %2141 = vmatpush1.bf16.msra.mxu0 %v2109
        %2142 = vmatprep.subr.bf16.mxu0 0
        %2143 = vmatpush1.bf16.msra.mxu0 %v2110
        %2144 = vmatprep.subr.bf16.mxu0 0
        %2145 = vmatpush1.bf16.msra.mxu0 %v2111
        %2146 = vmatprep.subr.bf16.mxu0 0
        %2147 = vmatpush1.bf16.msra.mxu0 %v2112
        %2148 = vmatprep.subr.bf16.mxu0 0
        %2149 = vmatpush1.bf16.msra.mxu0 %v2113
        %2150 = vmatprep.subr.bf16.mxu0 0
        %2151 = vmatpush1.bf16.msra.mxu0 %v2114
        %2152 = vmatprep.subr.bf16.mxu0 0
        %2153 = vmatpush1.bf16.msra.mxu0 %v2115
        %2154 = vmatprep.subr.bf16.mxu0 0
        %2155 = vmatpush1.bf16.msra.mxu0 %v2116
        %2156 = vmatprep.subr.bf16.mxu0 0
        %2157 = vmatpush1.bf16.msra.mxu0 %v2117
        %2158 = vmatprep.subr.bf16.mxu0 0
        %2159 = vmatpush1.bf16.msra.mxu0 %v2118
        %2160 = vmatprep.subr.bf16.mxu0 0
        %2161 = vmatpush1.bf16.msra.mxu0 %v2119
        %2162 = vmatprep.subr.bf16.mxu0 0
        %2163 = vmatpush1.bf16.msra.mxu0 %v2120
        %2164 = vmatprep.subr.bf16.mxu0 0
        %2165 = vmatpush1.bf16.msra.mxu0 %v2138
        %2166 = vmatprep.subr.bf16.mxu0 0
        %2167 = vmatpush1.bf16.msra.mxu0 0
        %2168 = vmatprep.subr.bf16.mxu0 0
        %2169 = vmatpush1.bf16.msra.mxu0 0
        %2170 = vmatprep.subr.bf16.mxu0 0
        %2171 = vmatpush1.bf16.msra.mxu0 0
        %2172 = vmatprep.mubr.bf16.mxu0 %v2135
        %2173 = vmatmul.mubr.bf16.gmra.mrb[0].mxu0 %v2031
        %v2174 = vpop.f32.mrb[0].mxu0
        %v2175 = vadd.f32 0.0, %v2174
        %v2176 = vpop.f32.mrb[0].mxu0
        %v2177 = vpop.f32.mrb[0].mxu0
        %v2178 = vpop.f32.mrb[0].mxu0
        %2179 = vdwg.mxu0
        %v2180 = vadd.f32 %v2017, %v2175
        %s2181 = scalar_lea.vmem [#allocation2], 19
        %v2182 = vld [vmem:[%s2181] ss:$8 sm:$0x3]
        %v2184 = vlaneseq
        %v2185 = vshrl.u32 %v2184, 7
        %v2186 = vsub.s32 0, %v2185
        %v2187 = vrot.slane %v2182, %v2186
        %v2188 = vlaneseq
        %v2189 = vshrl.u32 %v2188, 7
        %v2190 = vsub.s32 1, %v2189
        %v2191 = vrot.slane %v2182, %v2190
        %v2194 = vpack.c.bf16 %v2187, %v2187
        %v2195 = vpack.c.bf16 %v2191, %v2191
        %s2196 = scalar_lea.vmem %s3, 1100
        %v2197 = vld [vmem:[%s2196] sm:$0xf]
        %v2198 = vld [vmem:[%s2196 + $0x4] sm:$0xf]
        %v2199 = vld [vmem:[%s2196 + $0x8] sm:$0xf]
        %v2200 = vld [vmem:[%s2196 + $0xc] sm:$0xf]
        %v2201 = vld [vmem:[%s2196 + $0x10] sm:$0xf]
        %v2202 = vld [vmem:[%s2196 + $0x14] sm:$0xf]
        %v2203 = vld [vmem:[%s2196 + $0x18] sm:$0xf]
        %v2204 = vld [vmem:[%s2196 + $0x1c] sm:$0xf]
        %v2205 = vld [vmem:[%s2196 + $0x20] sm:$0xf]
        %v2206 = vld [vmem:[%s2196 + $0x24] sm:$0xf]
        %v2207 = vld [vmem:[%s2196 + $0x28] sm:$0xf]
        %v2208 = vld [vmem:[%s2196 + $0x2c] sm:$0xf]
        %v2209 = vld [vmem:[%s2196 + $0x30] sm:$0xf]
        %v2210 = vld [vmem:[%s2196 + $0x34] sm:$0xf]
        %v2211 = vld [vmem:[%s2196 + $0x38] sm:$0xf]
        %v2212 = vld [vmem:[%s2196 + $0x3c] sm:$0xf]
        %v2213 = vld [vmem:[%s2196 + $0x40] sm:$0xf]
        %v2214 = vld [vmem:[%s2196 + $0x44] sm:$0xf]
        %v2215 = vld [vmem:[%s2196 + $0x48] sm:$0xf]
        %v2216 = vld [vmem:[%s2196 + $0x4c] sm:$0xf]
        %v2217 = vld [vmem:[%s2196 + $0x50] sm:$0xf]
        %v2218 = vld [vmem:[%s2196 + $0x54] sm:$0xf]
        %v2219 = vld [vmem:[%s2196 + $0x58] sm:$0xf]
        %v2220 = vld [vmem:[%s2196 + $0x5c] sm:$0xf]
        %v2221 = vld [vmem:[%s2196 + $0x60] sm:$0x3]
        %v2247 = vunpack.c.l.b16 %v2197
        %v2248 = vunpack.c.l.b16 %v2198
        %v2249 = vunpack.c.l.b16 %v2199
        %v2250 = vunpack.c.l.b16 %v2200
        %v2251 = vunpack.c.l.b16 %v2201
        %v2252 = vunpack.c.l.b16 %v2202
        %v2253 = vunpack.c.l.b16 %v2203
        %v2254 = vunpack.c.l.b16 %v2204
        %v2255 = vunpack.c.l.b16 %v2205
        %v2256 = vunpack.c.l.b16 %v2206
        %v2257 = vunpack.c.l.b16 %v2207
        %v2258 = vunpack.c.l.b16 %v2208
        %v2259 = vunpack.c.l.b16 %v2209
        %v2260 = vunpack.c.l.b16 %v2210
        %v2261 = vunpack.c.l.b16 %v2211
        %v2262 = vunpack.c.l.b16 %v2212
        %v2263 = vunpack.c.l.b16 %v2213
        %v2264 = vunpack.c.l.b16 %v2214
        %v2265 = vunpack.c.l.b16 %v2215
        %v2266 = vunpack.c.l.b16 %v2216
        %v2267 = vunpack.c.l.b16 %v2217
        %v2268 = vunpack.c.l.b16 %v2218
        %v2269 = vunpack.c.l.b16 %v2219
        %v2270 = vunpack.c.l.b16 %v2220
        %v2271 = vunpack.c.l.b16 %v2221
        %v2272 = vpack.c.b16 %v2248, %v2247
        %v2273 = vpack.c.b16 %v2250, %v2249
        %v2274 = vpack.c.b16 %v2252, %v2251
        %v2275 = vpack.c.b16 %v2254, %v2253
        %v2276 = vpack.c.b16 %v2256, %v2255
        %v2277 = vpack.c.b16 %v2258, %v2257
        %v2278 = vpack.c.b16 %v2260, %v2259
        %v2279 = vpack.c.b16 %v2262, %v2261
        %v2280 = vpack.c.b16 %v2264, %v2263
        %v2281 = vpack.c.b16 %v2266, %v2265
        %v2282 = vpack.c.b16 %v2268, %v2267
        %v2283 = vpack.c.b16 %v2270, %v2269
        %v2284 = vpack.c.b16 %v2271, %v2271
        %v2298 = vsel %vm385, %v2195, 0
        %v2301 = vsel %vm330, %v2284, 0
        %2303 = vmatprep.subr.bf16.mxu0 0
        %2304 = vmatpush1.bf16.msra.mxu0 %v2272
        %2305 = vmatprep.subr.bf16.mxu0 0
        %2306 = vmatpush1.bf16.msra.mxu0 %v2273
        %2307 = vmatprep.subr.bf16.mxu0 0
        %2308 = vmatpush1.bf16.msra.mxu0 %v2274
        %2309 = vmatprep.subr.bf16.mxu0 0
        %2310 = vmatpush1.bf16.msra.mxu0 %v2275
        %2311 = vmatprep.subr.bf16.mxu0 0
        %2312 = vmatpush1.bf16.msra.mxu0 %v2276
        %2313 = vmatprep.subr.bf16.mxu0 0
        %2314 = vmatpush1.bf16.msra.mxu0 %v2277
        %2315 = vmatprep.subr.bf16.mxu0 0
        %2316 = vmatpush1.bf16.msra.mxu0 %v2278
        %2317 = vmatprep.subr.bf16.mxu0 0
        %2318 = vmatpush1.bf16.msra.mxu0 %v2279
        %2319 = vmatprep.subr.bf16.mxu0 0
        %2320 = vmatpush1.bf16.msra.mxu0 %v2280
        %2321 = vmatprep.subr.bf16.mxu0 0
        %2322 = vmatpush1.bf16.msra.mxu0 %v2281
        %2323 = vmatprep.subr.bf16.mxu0 0
        %2324 = vmatpush1.bf16.msra.mxu0 %v2282
        %2325 = vmatprep.subr.bf16.mxu0 0
        %2326 = vmatpush1.bf16.msra.mxu0 %v2283
        %2327 = vmatprep.subr.bf16.mxu0 0
        %2328 = vmatpush1.bf16.msra.mxu0 %v2301
        %2329 = vmatprep.subr.bf16.mxu0 0
        %2330 = vmatpush1.bf16.msra.mxu0 0
        %2331 = vmatprep.subr.bf16.mxu0 0
        %2332 = vmatpush1.bf16.msra.mxu0 0
        %2333 = vmatprep.subr.bf16.mxu0 0
        %2334 = vmatpush1.bf16.msra.mxu0 0
        %2335 = vmatprep.mubr.bf16.mxu0 %v2298
        %2336 = vmatmul.mubr.bf16.gmra.mrb[0].mxu0 %v2194
        %v2337 = vpop.f32.mrb[0].mxu0
        %v2338 = vadd.f32 0.0, %v2337
        %v2339 = vpop.f32.mrb[0].mxu0
        %v2340 = vpop.f32.mrb[0].mxu0
        %v2341 = vpop.f32.mrb[0].mxu0
        %2342 = vdwg.mxu0
        %v2343 = vadd.f32 %v2180, %v2338
        %s2344 = scalar_lea.vmem [#allocation2], 20
        %v2345 = vld [vmem:[%s2344] ss:$8 sm:$0x3]
        %v2347 = vlaneseq
        %v2348 = vshrl.u32 %v2347, 7
        %v2349 = vsub.s32 0, %v2348
        %v2350 = vrot.slane %v2345, %v2349
        %v2351 = vlaneseq
        %v2352 = vshrl.u32 %v2351, 7
        %v2353 = vsub.s32 1, %v2352
        %v2354 = vrot.slane %v2345, %v2353
        %v2357 = vpack.c.bf16 %v2350, %v2350
        %v2358 = vpack.c.bf16 %v2354, %v2354
        %s2359 = scalar_lea.vmem %s3, 1200
        %v2360 = vld [vmem:[%s2359] sm:$0xf]
        %v2361 = vld [vmem:[%s2359 + $0x4] sm:$0xf]
        %v2362 = vld [vmem:[%s2359 + $0x8] sm:$0xf]
        %v2363 = vld [vmem:[%s2359 + $0xc] sm:$0xf]
        %v2364 = vld [vmem:[%s2359 + $0x10] sm:$0xf]
        %v2365 = vld [vmem:[%s2359 + $0x14] sm:$0xf]
        %v2366 = vld [vmem:[%s2359 + $0x18] sm:$0xf]
        %v2367 = vld [vmem:[%s2359 + $0x1c] sm:$0xf]
        %v2368 = vld [vmem:[%s2359 + $0x20] sm:$0xf]
        %v2369 = vld [vmem:[%s2359 + $0x24] sm:$0xf]
        %v2370 = vld [vmem:[%s2359 + $0x28] sm:$0xf]
        %v2371 = vld [vmem:[%s2359 + $0x2c] sm:$0xf]
        %v2372 = vld [vmem:[%s2359 + $0x30] sm:$0xf]
        %v2373 = vld [vmem:[%s2359 + $0x34] sm:$0xf]
        %v2374 = vld [vmem:[%s2359 + $0x38] sm:$0xf]
        %v2375 = vld [vmem:[%s2359 + $0x3c] sm:$0xf]
        %v2376 = vld [vmem:[%s2359 + $0x40] sm:$0xf]
        %v2377 = vld [vmem:[%s2359 + $0x44] sm:$0xf]
        %v2378 = vld [vmem:[%s2359 + $0x48] sm:$0xf]
        %v2379 = vld [vmem:[%s2359 + $0x4c] sm:$0xf]
        %v2380 = vld [vmem:[%s2359 + $0x50] sm:$0xf]
        %v2381 = vld [vmem:[%s2359 + $0x54] sm:$0xf]
        %v2382 = vld [vmem:[%s2359 + $0x58] sm:$0xf]
        %v2383 = vld [vmem:[%s2359 + $0x5c] sm:$0xf]
        %v2384 = vld [vmem:[%s2359 + $0x60] sm:$0x3]
        %v2410 = vunpack.c.l.b16 %v2360
        %v2411 = vunpack.c.l.b16 %v2361
        %v2412 = vunpack.c.l.b16 %v2362
        %v2413 = vunpack.c.l.b16 %v2363
        %v2414 = vunpack.c.l.b16 %v2364
        %v2415 = vunpack.c.l.b16 %v2365
        %v2416 = vunpack.c.l.b16 %v2366
        %v2417 = vunpack.c.l.b16 %v2367
        %v2418 = vunpack.c.l.b16 %v2368
        %v2419 = vunpack.c.l.b16 %v2369
        %v2420 = vunpack.c.l.b16 %v2370
        %v2421 = vunpack.c.l.b16 %v2371
        %v2422 = vunpack.c.l.b16 %v2372
        %v2423 = vunpack.c.l.b16 %v2373
        %v2424 = vunpack.c.l.b16 %v2374
        %v2425 = vunpack.c.l.b16 %v2375
        %v2426 = vunpack.c.l.b16 %v2376
        %v2427 = vunpack.c.l.b16 %v2377
        %v2428 = vunpack.c.l.b16 %v2378
        %v2429 = vunpack.c.l.b16 %v2379
        %v2430 = vunpack.c.l.b16 %v2380
        %v2431 = vunpack.c.l.b16 %v2381
        %v2432 = vunpack.c.l.b16 %v2382
        %v2433 = vunpack.c.l.b16 %v2383
        %v2434 = vunpack.c.l.b16 %v2384
        %v2435 = vpack.c.b16 %v2411, %v2410
        %v2436 = vpack.c.b16 %v2413, %v2412
        %v2437 = vpack.c.b16 %v2415, %v2414
        %v2438 = vpack.c.b16 %v2417, %v2416
        %v2439 = vpack.c.b16 %v2419, %v2418
        %v2440 = vpack.c.b16 %v2421, %v2420
        %v2441 = vpack.c.b16 %v2423, %v2422
        %v2442 = vpack.c.b16 %v2425, %v2424
        %v2443 = vpack.c.b16 %v2427, %v2426
        %v2444 = vpack.c.b16 %v2429, %v2428
        %v2445 = vpack.c.b16 %v2431, %v2430
        %v2446 = vpack.c.b16 %v2433, %v2432
        %v2447 = vpack.c.b16 %v2434, %v2434
        %v2461 = vsel %vm385, %v2358, 0
        %v2464 = vsel %vm330, %v2447, 0
        %2466 = vmatprep.subr.bf16.mxu0 0
        %2467 = vmatpush1.bf16.msra.mxu0 %v2435
        %2468 = vmatprep.subr.bf16.mxu0 0
        %2469 = vmatpush1.bf16.msra.mxu0 %v2436
        %2470 = vmatprep.subr.bf16.mxu0 0
        %2471 = vmatpush1.bf16.msra.mxu0 %v2437
        %2472 = vmatprep.subr.bf16.mxu0 0
        %2473 = vmatpush1.bf16.msra.mxu0 %v2438
        %2474 = vmatprep.subr.bf16.mxu0 0
        %2475 = vmatpush1.bf16.msra.mxu0 %v2439
        %2476 = vmatprep.subr.bf16.mxu0 0
        %2477 = vmatpush1.bf16.msra.mxu0 %v2440
        %2478 = vmatprep.subr.bf16.mxu0 0
        %2479 = vmatpush1.bf16.msra.mxu0 %v2441
        %2480 = vmatprep.subr.bf16.mxu0 0
        %2481 = vmatpush1.bf16.msra.mxu0 %v2442
        %2482 = vmatprep.subr.bf16.mxu0 0
        %2483 = vmatpush1.bf16.msra.mxu0 %v2443
        %2484 = vmatprep.subr.bf16.mxu0 0
        %2485 = vmatpush1.bf16.msra.mxu0 %v2444
        %2486 = vmatprep.subr.bf16.mxu0 0
        %2487 = vmatpush1.bf16.msra.mxu0 %v2445
        %2488 = vmatprep.subr.bf16.mxu0 0
        %2489 = vmatpush1.bf16.msra.mxu0 %v2446
        %2490 = vmatprep.subr.bf16.mxu0 0
        %2491 = vmatpush1.bf16.msra.mxu0 %v2464
        %2492 = vmatprep.subr.bf16.mxu0 0
        %2493 = vmatpush1.bf16.msra.mxu0 0
        %2494 = vmatprep.subr.bf16.mxu0 0
        %2495 = vmatpush1.bf16.msra.mxu0 0
        %2496 = vmatprep.subr.bf16.mxu0 0
        %2497 = vmatpush1.bf16.msra.mxu0 0
        %2498 = vmatprep.mubr.bf16.mxu0 %v2461
        %2499 = vmatmul.mubr.bf16.gmra.mrb[0].mxu0 %v2357
        %v2500 = vpop.f32.mrb[0].mxu0
        %v2501 = vadd.f32 0.0, %v2500
        %v2502 = vpop.f32.mrb[0].mxu0
        %v2503 = vpop.f32.mrb[0].mxu0
        %v2504 = vpop.f32.mrb[0].mxu0
        %2505 = vdwg.mxu0
        %v2506 = vadd.f32 %v2343, %v2501
        %s2507 = scalar_lea.vmem [#allocation2], 21
        %v2508 = vld [vmem:[%s2507] ss:$8 sm:$0x3]
        %v2510 = vlaneseq
        %v2511 = vshrl.u32 %v2510, 7
        %v2512 = vsub.s32 0, %v2511
        %v2513 = vrot.slane %v2508, %v2512
        %v2514 = vlaneseq
        %v2515 = vshrl.u32 %v2514, 7
        %v2516 = vsub.s32 1, %v2515
        %v2517 = vrot.slane %v2508, %v2516
        %v2520 = vpack.c.bf16 %v2513, %v2513
        %v2521 = vpack.c.bf16 %v2517, %v2517
        %s2522 = scalar_lea.vmem %s3, 1300
        %v2523 = vld [vmem:[%s2522] sm:$0xf]
        %v2524 = vld [vmem:[%s2522 + $0x4] sm:$0xf]
        %v2525 = vld [vmem:[%s2522 + $0x8] sm:$0xf]
        %v2526 = vld [vmem:[%s2522 + $0xc] sm:$0xf]
        %v2527 = vld [vmem:[%s2522 + $0x10] sm:$0xf]
        %v2528 = vld [vmem:[%s2522 + $0x14] sm:$0xf]
        %v2529 = vld [vmem:[%s2522 + $0x18] sm:$0xf]
        %v2530 = vld [vmem:[%s2522 + $0x1c] sm:$0xf]
        %v2531 = vld [vmem:[%s2522 + $0x20] sm:$0xf]
        %v2532 = vld [vmem:[%s2522 + $0x24] sm:$0xf]
        %v2533 = vld [vmem:[%s2522 + $0x28] sm:$0xf]
        %v2534 = vld [vmem:[%s2522 + $0x2c] sm:$0xf]
        %v2535 = vld [vmem:[%s2522 + $0x30] sm:$0xf]
        %v2536 = vld [vmem:[%s2522 + $0x34] sm:$0xf]
        %v2537 = vld [vmem:[%s2522 + $0x38] sm:$0xf]
        %v2538 = vld [vmem:[%s2522 + $0x3c] sm:$0xf]
        %v2539 = vld [vmem:[%s2522 + $0x40] sm:$0xf]
        %v2540 = vld [vmem:[%s2522 + $0x44] sm:$0xf]
        %v2541 = vld [vmem:[%s2522 + $0x48] sm:$0xf]
        %v2542 = vld [vmem:[%s2522 + $0x4c] sm:$0xf]
        %v2543 = vld [vmem:[%s2522 + $0x50] sm:$0xf]
        %v2544 = vld [vmem:[%s2522 + $0x54] sm:$0xf]
        %v2545 = vld [vmem:[%s2522 + $0x58] sm:$0xf]
        %v2546 = vld [vmem:[%s2522 + $0x5c] sm:$0xf]
        %v2547 = vld [vmem:[%s2522 + $0x60] sm:$0x3]
        %v2573 = vunpack.c.l.b16 %v2523
        %v2574 = vunpack.c.l.b16 %v2524
        %v2575 = vunpack.c.l.b16 %v2525
        %v2576 = vunpack.c.l.b16 %v2526
        %v2577 = vunpack.c.l.b16 %v2527
        %v2578 = vunpack.c.l.b16 %v2528
        %v2579 = vunpack.c.l.b16 %v2529
        %v2580 = vunpack.c.l.b16 %v2530
        %v2581 = vunpack.c.l.b16 %v2531
        %v2582 = vunpack.c.l.b16 %v2532
        %v2583 = vunpack.c.l.b16 %v2533
        %v2584 = vunpack.c.l.b16 %v2534
        %v2585 = vunpack.c.l.b16 %v2535
        %v2586 = vunpack.c.l.b16 %v2536
        %v2587 = vunpack.c.l.b16 %v2537
        %v2588 = vunpack.c.l.b16 %v2538
        %v2589 = vunpack.c.l.b16 %v2539
        %v2590 = vunpack.c.l.b16 %v2540
        %v2591 = vunpack.c.l.b16 %v2541
        %v2592 = vunpack.c.l.b16 %v2542
        %v2593 = vunpack.c.l.b16 %v2543
        %v2594 = vunpack.c.l.b16 %v2544
        %v2595 = vunpack.c.l.b16 %v2545
        %v2596 = vunpack.c.l.b16 %v2546
        %v2597 = vunpack.c.l.b16 %v2547
        %v2598 = vpack.c.b16 %v2574, %v2573
        %v2599 = vpack.c.b16 %v2576, %v2575
        %v2600 = vpack.c.b16 %v2578, %v2577
        %v2601 = vpack.c.b16 %v2580, %v2579
        %v2602 = vpack.c.b16 %v2582, %v2581
        %v2603 = vpack.c.b16 %v2584, %v2583
        %v2604 = vpack.c.b16 %v2586, %v2585
        %v2605 = vpack.c.b16 %v2588, %v2587
        %v2606 = vpack.c.b16 %v2590, %v2589
        %v2607 = vpack.c.b16 %v2592, %v2591
        %v2608 = vpack.c.b16 %v2594, %v2593
        %v2609 = vpack.c.b16 %v2596, %v2595
        %v2610 = vpack.c.b16 %v2597, %v2597
        %v2624 = vsel %vm385, %v2521, 0
        %v2627 = vsel %vm330, %v2610, 0
        %2629 = vmatprep.subr.bf16.mxu0 0
        %2630 = vmatpush1.bf16.msra.mxu0 %v2598
        %2631 = vmatprep.subr.bf16.mxu0 0
        %2632 = vmatpush1.bf16.msra.mxu0 %v2599
        %2633 = vmatprep.subr.bf16.mxu0 0
        %2634 = vmatpush1.bf16.msra.mxu0 %v2600
        %2635 = vmatprep.subr.bf16.mxu0 0
        %2636 = vmatpush1.bf16.msra.mxu0 %v2601
        %2637 = vmatprep.subr.bf16.mxu0 0
        %2638 = vmatpush1.bf16.msra.mxu0 %v2602
        %2639 = vmatprep.subr.bf16.mxu0 0
        %2640 = vmatpush1.bf16.msra.mxu0 %v2603
        %2641 = vmatprep.subr.bf16.mxu0 0
        %2642 = vmatpush1.bf16.msra.mxu0 %v2604
        %2643 = vmatprep.subr.bf16.mxu0 0
        %2644 = vmatpush1.bf16.msra.mxu0 %v2605
        %2645 = vmatprep.subr.bf16.mxu0 0
        %2646 = vmatpush1.bf16.msra.mxu0 %v2606
        %2647 = vmatprep.subr.bf16.mxu0 0
        %2648 = vmatpush1.bf16.msra.mxu0 %v2607
        %2649 = vmatprep.subr.bf16.mxu0 0
        %2650 = vmatpush1.bf16.msra.mxu0 %v2608
        %2651 = vmatprep.subr.bf16.mxu0 0
        %2652 = vmatpush1.bf16.msra.mxu0 %v2609
        %2653 = vmatprep.subr.bf16.mxu0 0
        %2654 = vmatpush1.bf16.msra.mxu0 %v2627
        %2655 = vmatprep.subr.bf16.mxu0 0
        %2656 = vmatpush1.bf16.msra.mxu0 0
        %2657 = vmatprep.subr.bf16.mxu0 0
        %2658 = vmatpush1.bf16.msra.mxu0 0
        %2659 = vmatprep.subr.bf16.mxu0 0
        %2660 = vmatpush1.bf16.msra.mxu0 0
        %2661 = vmatprep.mubr.bf16.mxu0 %v2624
        %2662 = vmatmul.mubr.bf16.gmra.mrb[0].mxu0 %v2520
        %v2663 = vpop.f32.mrb[0].mxu0
        %v2664 = vadd.f32 0.0, %v2663
        %v2665 = vpop.f32.mrb[0].mxu0
        %v2666 = vpop.f32.mrb[0].mxu0
        %v2667 = vpop.f32.mrb[0].mxu0
        %2668 = vdwg.mxu0
        %v2669 = vadd.f32 %v2506, %v2664
        %s2670 = scalar_lea.vmem [#allocation2], 22
        %v2671 = vld [vmem:[%s2670] ss:$8 sm:$0x3]
        %v2673 = vlaneseq
        %v2674 = vshrl.u32 %v2673, 7
        %v2675 = vsub.s32 0, %v2674
        %v2676 = vrot.slane %v2671, %v2675
        %v2677 = vlaneseq
        %v2678 = vshrl.u32 %v2677, 7
        %v2679 = vsub.s32 1, %v2678
        %v2680 = vrot.slane %v2671, %v2679
        %v2683 = vpack.c.bf16 %v2676, %v2676
        %v2684 = vpack.c.bf16 %v2680, %v2680
        %s2685 = scalar_lea.vmem %s3, 1400
        %v2686 = vld [vmem:[%s2685] sm:$0xf]
        %v2687 = vld [vmem:[%s2685 + $0x4] sm:$0xf]
        %v2688 = vld [vmem:[%s2685 + $0x8] sm:$0xf]
        %v2689 = vld [vmem:[%s2685 + $0xc] sm:$0xf]
        %v2690 = vld [vmem:[%s2685 + $0x10] sm:$0xf]
        %v2691 = vld [vmem:[%s2685 + $0x14] sm:$0xf]
        %v2692 = vld [vmem:[%s2685 + $0x18] sm:$0xf]
        %v2693 = vld [vmem:[%s2685 + $0x1c] sm:$0xf]
        %v2694 = vld [vmem:[%s2685 + $0x20] sm:$0xf]
        %v2695 = vld [vmem:[%s2685 + $0x24] sm:$0xf]
        %v2696 = vld [vmem:[%s2685 + $0x28] sm:$0xf]
        %v2697 = vld [vmem:[%s2685 + $0x2c] sm:$0xf]
        %v2698 = vld [vmem:[%s2685 + $0x30] sm:$0xf]
        %v2699 = vld [vmem:[%s2685 + $0x34] sm:$0xf]
        %v2700 = vld [vmem:[%s2685 + $0x38] sm:$0xf]
        %v2701 = vld [vmem:[%s2685 + $0x3c] sm:$0xf]
        %v2702 = vld [vmem:[%s2685 + $0x40] sm:$0xf]
        %v2703 = vld [vmem:[%s2685 + $0x44] sm:$0xf]
        %v2704 = vld [vmem:[%s2685 + $0x48] sm:$0xf]
        %v2705 = vld [vmem:[%s2685 + $0x4c] sm:$0xf]
        %v2706 = vld [vmem:[%s2685 + $0x50] sm:$0xf]
        %v2707 = vld [vmem:[%s2685 + $0x54] sm:$0xf]
        %v2708 = vld [vmem:[%s2685 + $0x58] sm:$0xf]
        %v2709 = vld [vmem:[%s2685 + $0x5c] sm:$0xf]
        %v2710 = vld [vmem:[%s2685 + $0x60] sm:$0x3]
        %v2736 = vunpack.c.l.b16 %v2686
        %v2737 = vunpack.c.l.b16 %v2687
        %v2738 = vunpack.c.l.b16 %v2688
        %v2739 = vunpack.c.l.b16 %v2689
        %v2740 = vunpack.c.l.b16 %v2690
        %v2741 = vunpack.c.l.b16 %v2691
        %v2742 = vunpack.c.l.b16 %v2692
        %v2743 = vunpack.c.l.b16 %v2693
        %v2744 = vunpack.c.l.b16 %v2694
        %v2745 = vunpack.c.l.b16 %v2695
        %v2746 = vunpack.c.l.b16 %v2696
        %v2747 = vunpack.c.l.b16 %v2697
        %v2748 = vunpack.c.l.b16 %v2698
        %v2749 = vunpack.c.l.b16 %v2699
        %v2750 = vunpack.c.l.b16 %v2700
        %v2751 = vunpack.c.l.b16 %v2701
        %v2752 = vunpack.c.l.b16 %v2702
        %v2753 = vunpack.c.l.b16 %v2703
        %v2754 = vunpack.c.l.b16 %v2704
        %v2755 = vunpack.c.l.b16 %v2705
        %v2756 = vunpack.c.l.b16 %v2706
        %v2757 = vunpack.c.l.b16 %v2707
        %v2758 = vunpack.c.l.b16 %v2708
        %v2759 = vunpack.c.l.b16 %v2709
        %v2760 = vunpack.c.l.b16 %v2710
        %v2761 = vpack.c.b16 %v2737, %v2736
        %v2762 = vpack.c.b16 %v2739, %v2738
        %v2763 = vpack.c.b16 %v2741, %v2740
        %v2764 = vpack.c.b16 %v2743, %v2742
        %v2765 = vpack.c.b16 %v2745, %v2744
        %v2766 = vpack.c.b16 %v2747, %v2746
        %v2767 = vpack.c.b16 %v2749, %v2748
        %v2768 = vpack.c.b16 %v2751, %v2750
        %v2769 = vpack.c.b16 %v2753, %v2752
        %v2770 = vpack.c.b16 %v2755, %v2754
        %v2771 = vpack.c.b16 %v2757, %v2756
        %v2772 = vpack.c.b16 %v2759, %v2758
        %v2773 = vpack.c.b16 %v2760, %v2760
        %v2787 = vsel %vm385, %v2684, 0
        %v2790 = vsel %vm330, %v2773, 0
        %2792 = vmatprep.subr.bf16.mxu0 0
        %2793 = vmatpush1.bf16.msra.mxu0 %v2761
        %2794 = vmatprep.subr.bf16.mxu0 0
        %2795 = vmatpush1.bf16.msra.mxu0 %v2762
        %2796 = vmatprep.subr.bf16.mxu0 0
        %2797 = vmatpush1.bf16.msra.mxu0 %v2763
        %2798 = vmatprep.subr.bf16.mxu0 0
        %2799 = vmatpush1.bf16.msra.mxu0 %v2764
        %2800 = vmatprep.subr.bf16.mxu0 0
        %2801 = vmatpush1.bf16.msra.mxu0 %v2765
        %2802 = vmatprep.subr.bf16.mxu0 0
        %2803 = vmatpush1.bf16.msra.mxu0 %v2766
        %2804 = vmatprep.subr.bf16.mxu0 0
        %2805 = vmatpush1.bf16.msra.mxu0 %v2767
        %2806 = vmatprep.subr.bf16.mxu0 0
        %2807 = vmatpush1.bf16.msra.mxu0 %v2768
        %2808 = vmatprep.subr.bf16.mxu0 0
        %2809 = vmatpush1.bf16.msra.mxu0 %v2769
        %2810 = vmatprep.subr.bf16.mxu0 0
        %2811 = vmatpush1.bf16.msra.mxu0 %v2770
        %2812 = vmatprep.subr.bf16.mxu0 0
        %2813 = vmatpush1.bf16.msra.mxu0 %v2771
        %2814 = vmatprep.subr.bf16.mxu0 0
        %2815 = vmatpush1.bf16.msra.mxu0 %v2772
        %2816 = vmatprep.subr.bf16.mxu0 0
        %2817 = vmatpush1.bf16.msra.mxu0 %v2790
        %2818 = vmatprep.subr.bf16.mxu0 0
        %2819 = vmatpush1.bf16.msra.mxu0 0
        %2820 = vmatprep.subr.bf16.mxu0 0
        %2821 = vmatpush1.bf16.msra.mxu0 0
        %2822 = vmatprep.subr.bf16.mxu0 0
        %2823 = vmatpush1.bf16.msra.mxu0 0
        %2824 = vmatprep.mubr.bf16.mxu0 %v2787
        %2825 = vmatmul.mubr.bf16.gmra.mrb[0].mxu0 %v2683
        %v2826 = vpop.f32.mrb[0].mxu0
        %v2827 = vadd.f32 0.0, %v2826
        %v2828 = vpop.f32.mrb[0].mxu0
        %v2829 = vpop.f32.mrb[0].mxu0
        %v2830 = vpop.f32.mrb[0].mxu0
        %2831 = vdwg.mxu0
        %v2832 = vadd.f32 %v2669, %v2827
        %s2833 = scalar_lea.vmem [#allocation2], 23
        %v2834 = vld [vmem:[%s2833] ss:$8 sm:$0x3]
        %v2836 = vlaneseq
        %v2837 = vshrl.u32 %v2836, 7
        %v2838 = vsub.s32 0, %v2837
        %v2839 = vrot.slane %v2834, %v2838
        %v2840 = vlaneseq
        %v2841 = vshrl.u32 %v2840, 7
        %v2842 = vsub.s32 1, %v2841
        %v2843 = vrot.slane %v2834, %v2842
        %v2846 = vpack.c.bf16 %v2839, %v2839
        %v2847 = vpack.c.bf16 %v2843, %v2843
        %s2848 = scalar_lea.vmem %s3, 1500
        %v2849 = vld [vmem:[%s2848] sm:$0xf]
        %v2850 = vld [vmem:[%s2848 + $0x4] sm:$0xf]
        %v2851 = vld [vmem:[%s2848 + $0x8] sm:$0xf]
        %v2852 = vld [vmem:[%s2848 + $0xc] sm:$0xf]
        %v2853 = vld [vmem:[%s2848 + $0x10] sm:$0xf]
        %v2854 = vld [vmem:[%s2848 + $0x14] sm:$0xf]
        %v2855 = vld [vmem:[%s2848 + $0x18] sm:$0xf]
        %v2856 = vld [vmem:[%s2848 + $0x1c] sm:$0xf]
        %v2857 = vld [vmem:[%s2848 + $0x20] sm:$0xf]
        %v2858 = vld [vmem:[%s2848 + $0x24] sm:$0xf]
        %v2859 = vld [vmem:[%s2848 + $0x28] sm:$0xf]
        %v2860 = vld [vmem:[%s2848 + $0x2c] sm:$0xf]
        %v2861 = vld [vmem:[%s2848 + $0x30] sm:$0xf]
        %v2862 = vld [vmem:[%s2848 + $0x34] sm:$0xf]
        %v2863 = vld [vmem:[%s2848 + $0x38] sm:$0xf]
        %v2864 = vld [vmem:[%s2848 + $0x3c] sm:$0xf]
        %v2865 = vld [vmem:[%s2848 + $0x40] sm:$0xf]
        %v2866 = vld [vmem:[%s2848 + $0x44] sm:$0xf]
        %v2867 = vld [vmem:[%s2848 + $0x48] sm:$0xf]
        %v2868 = vld [vmem:[%s2848 + $0x4c] sm:$0xf]
        %v2869 = vld [vmem:[%s2848 + $0x50] sm:$0xf]
        %v2870 = vld [vmem:[%s2848 + $0x54] sm:$0xf]
        %v2871 = vld [vmem:[%s2848 + $0x58] sm:$0xf]
        %v2872 = vld [vmem:[%s2848 + $0x5c] sm:$0xf]
        %v2873 = vld [vmem:[%s2848 + $0x60] sm:$0x3]
        %v2899 = vunpack.c.l.b16 %v2849
        %v2900 = vunpack.c.l.b16 %v2850
        %v2901 = vunpack.c.l.b16 %v2851
        %v2902 = vunpack.c.l.b16 %v2852
        %v2903 = vunpack.c.l.b16 %v2853
        %v2904 = vunpack.c.l.b16 %v2854
        %v2905 = vunpack.c.l.b16 %v2855
        %v2906 = vunpack.c.l.b16 %v2856
        %v2907 = vunpack.c.l.b16 %v2857
        %v2908 = vunpack.c.l.b16 %v2858
        %v2909 = vunpack.c.l.b16 %v2859
        %v2910 = vunpack.c.l.b16 %v2860
        %v2911 = vunpack.c.l.b16 %v2861
        %v2912 = vunpack.c.l.b16 %v2862
        %v2913 = vunpack.c.l.b16 %v2863
        %v2914 = vunpack.c.l.b16 %v2864
        %v2915 = vunpack.c.l.b16 %v2865
        %v2916 = vunpack.c.l.b16 %v2866
        %v2917 = vunpack.c.l.b16 %v2867
        %v2918 = vunpack.c.l.b16 %v2868
        %v2919 = vunpack.c.l.b16 %v2869
        %v2920 = vunpack.c.l.b16 %v2870
        %v2921 = vunpack.c.l.b16 %v2871
        %v2922 = vunpack.c.l.b16 %v2872
        %v2923 = vunpack.c.l.b16 %v2873
        %v2924 = vpack.c.b16 %v2900, %v2899
        %v2925 = vpack.c.b16 %v2902, %v2901
        %v2926 = vpack.c.b16 %v2904, %v2903
        %v2927 = vpack.c.b16 %v2906, %v2905
        %v2928 = vpack.c.b16 %v2908, %v2907
        %v2929 = vpack.c.b16 %v2910, %v2909
        %v2930 = vpack.c.b16 %v2912, %v2911
        %v2931 = vpack.c.b16 %v2914, %v2913
        %v2932 = vpack.c.b16 %v2916, %v2915
        %v2933 = vpack.c.b16 %v2918, %v2917
        %v2934 = vpack.c.b16 %v2920, %v2919
        %v2935 = vpack.c.b16 %v2922, %v2921
        %v2936 = vpack.c.b16 %v2923, %v2923
        %v2950 = vsel %vm385, %v2847, 0
        %v2953 = vsel %vm330, %v2936, 0
        %2955 = vmatprep.subr.bf16.mxu0 0
        %2956 = vmatpush1.bf16.msra.mxu0 %v2924
        %2957 = vmatprep.subr.bf16.mxu0 0
        %2958 = vmatpush1.bf16.msra.mxu0 %v2925
        %2959 = vmatprep.subr.bf16.mxu0 0
        %2960 = vmatpush1.bf16.msra.mxu0 %v2926
        %2961 = vmatprep.subr.bf16.mxu0 0
        %2962 = vmatpush1.bf16.msra.mxu0 %v2927
        %2963 = vmatprep.subr.bf16.mxu0 0
        %2964 = vmatpush1.bf16.msra.mxu0 %v2928
        %2965 = vmatprep.subr.bf16.mxu0 0
        %2966 = vmatpush1.bf16.msra.mxu0 %v2929
        %2967 = vmatprep.subr.bf16.mxu0 0
        %2968 = vmatpush1.bf16.msra.mxu0 %v2930
        %2969 = vmatprep.subr.bf16.mxu0 0
        %2970 = vmatpush1.bf16.msra.mxu0 %v2931
        %2971 = vmatprep.subr.bf16.mxu0 0
        %2972 = vmatpush1.bf16.msra.mxu0 %v2932
        %2973 = vmatprep.subr.bf16.mxu0 0
        %2974 = vmatpush1.bf16.msra.mxu0 %v2933
        %2975 = vmatprep.subr.bf16.mxu0 0
        %2976 = vmatpush1.bf16.msra.mxu0 %v2934
        %2977 = vmatprep.subr.bf16.mxu0 0
        %2978 = vmatpush1.bf16.msra.mxu0 %v2935
        %2979 = vmatprep.subr.bf16.mxu0 0
        %2980 = vmatpush1.bf16.msra.mxu0 %v2953
        %2981 = vmatprep.subr.bf16.mxu0 0
        %2982 = vmatpush1.bf16.msra.mxu0 0
        %2983 = vmatprep.subr.bf16.mxu0 0
        %2984 = vmatpush1.bf16.msra.mxu0 0
        %2985 = vmatprep.subr.bf16.mxu0 0
        %2986 = vmatpush1.bf16.msra.mxu0 0
        %2987 = vmatprep.mubr.bf16.mxu0 %v2950
        %2988 = vmatmul.mubr.bf16.gmra.mrb[0].mxu0 %v2846
        %v2989 = vpop.f32.mrb[0].mxu0
        %v2990 = vadd.f32 0.0, %v2989
        %v2991 = vpop.f32.mrb[0].mxu0
        %v2992 = vpop.f32.mrb[0].mxu0
        %v2993 = vpop.f32.mrb[0].mxu0
        %2994 = vdwg.mxu0
        %v2995 = vadd.f32 %v2832, %v2990
        %v2996 = vmax.f32 %v2995, 0.0
        %v2997 = vpack.c.bf16 %v2996, %v2996
        %v2998 = vld [vmem:[%s5] sm:$0xf]
        %v2999 = vld [vmem:[%s5 + $0x4] sm:$0xf]
        %v3000 = vld [vmem:[%s5 + $0x8] sm:$0xf]
        %v3001 = vld [vmem:[%s5 + $0xc] sm:$0xf]
        %v3002 = vld [vmem:[%s6] sm:$0x1]
        %v3007 = vunpack.c.l.b16 %v2998
        %v3008 = vunpack.c.l.b16 %v2999
        %v3009 = vunpack.c.l.b16 %v3000
        %v3010 = vunpack.c.l.b16 %v3001
        %v3011 = vpack.c.b16 %v3008, %v3007
        %v3012 = vpack.c.b16 %v3010, %v3009
        %vm3015 = vcmask 261120
        %v3017 = vsel %vm3015, %v2997, 0
        %3019 = vmatprep.subr.bf16.mxu0 0
        %3020 = vmatpush1.bf16.msra.mxu0 %v3011
        %3021 = vmatprep.subr.bf16.mxu0 0
        %3022 = vmatpush1.bf16.msra.mxu0 %v3012
        %3023 = vmatprep.subr.bf16.mxu0 0
        %3024 = vmatpush1.bf16.msra.mxu0 0
        %3025 = vmatprep.subr.bf16.mxu0 0
        %3026 = vmatpush1.bf16.msra.mxu0 0
        %3027 = vmatprep.subr.bf16.mxu0 0
        %3028 = vmatpush1.bf16.msra.mxu0 0
        %3029 = vmatprep.subr.bf16.mxu0 0
        %3030 = vmatpush1.bf16.msra.mxu0 0
        %3031 = vmatprep.subr.bf16.mxu0 0
        %3032 = vmatpush1.bf16.msra.mxu0 0
        %3033 = vmatprep.subr.bf16.mxu0 0
        %3034 = vmatpush1.bf16.msra.mxu0 0
        %3035 = vmatprep.subr.bf16.mxu0 0
        %3036 = vmatpush1.bf16.msra.mxu0 0
        %3037 = vmatprep.subr.bf16.mxu0 0
        %3038 = vmatpush1.bf16.msra.mxu0 0
        %3039 = vmatprep.subr.bf16.mxu0 0
        %3040 = vmatpush1.bf16.msra.mxu0 0
        %3041 = vmatprep.subr.bf16.mxu0 0
        %3042 = vmatpush1.bf16.msra.mxu0 0
        %3043 = vmatprep.subr.bf16.mxu0 0
        %3044 = vmatpush1.bf16.msra.mxu0 0
        %3045 = vmatprep.subr.bf16.mxu0 0
        %3046 = vmatpush1.bf16.msra.mxu0 0
        %3047 = vmatprep.subr.bf16.mxu0 0
        %3048 = vmatpush1.bf16.msra.mxu0 0
        %3049 = vmatprep.subr.bf16.mxu0 0
        %3050 = vmatpush1.bf16.msra.mxu0 0
        %3051 = vmatprep.mubr.bf16.mxu0 0
        %3052 = vmatmul.mubr.bf16.gmra.mrb[0].mxu0 %v3017
        %v3053 = vpop.f32.mrb[0].mxu0
        %v3054 = vadd.f32 %v3002, %v3053
        %v3055 = vpop.f32.mrb[0].mxu0
        %v3056 = vpop.f32.mrb[0].mxu0
        %v3057 = vpop.f32.mrb[0].mxu0
        %3058 = vdwg.mxu0
        %v3059 = vmax.f32 %v3054, 0.0
        %vm3060 = vcmask 253952
        %3061 = vst.msk [vmem:[%s270] sm:$0x1] %vm3060, %v3059
        %s3062 = sand.u32 %s181, 1
        %s3063 = scalar_lea.sflag [#allocation4], %s3062
        %s3064 = sand.u32 %s181, 1
        %s3065 = scalar_lea.vmem [#allocation3], %s3064
        // Predicated region
        $region49: #{cnn_layer_forward.1} parent=47 // pred_check
          %p3066 = pneg %p191
        $region50: #{cnn_layer_forward.1} parent=47 // pred_check_branch
          %3068 = sbr.rel (%p3066) target = $region52
        $region51: #{cnn_layer_forward.1} parent=47 // pred_region
          %s3070 = ssub.s32 16, 16
          %3071 = vsyncadd %s3063, %s3070
          %s3072 = smul.addr %s21, 16
          %s3073 = scalar_lea.hbm %s7, %s3072
          %s3075 = sshll.u32 %s3065, 4
          %s3076 = int_to_ptr.vmem [resolvable:$true] %s3075
          %3078 = dma.vmem_to_hbm [thread:$0]  %s3076, 16, %s3073, %s3063
        $region52: #{cnn_layer_forward.1} parent=47 // pred_fallthru
          _
      $region48: #{cnn_layer_forward.1} parent=5 // pred_fallthru
        _
      %p3079 = scmp.le.s32.totalorder 2, %s16
      // Predicated region
      $region53: #{cnn_layer_forward.1} parent=5 // pred_check
        %p3080 = pneg %p3079
      $region54: #{cnn_layer_forward.1} parent=5 // pred_check_branch
        %3082 = sbr.rel (%p3080) target = $region56
      $region55: #{cnn_layer_forward.1} parent=5 // pred_region
        %s3083 = ssub.s32 %s16, 2
        // Predicated region
        $region57: #{cnn_layer_forward.1} parent=55 // pred_check
          %p3084 = pneg %p197
        $region58: #{cnn_layer_forward.1} parent=55 // pred_check_branch
          %3086 = sbr.rel (%p3084) target = $region60
        $region59: #{cnn_layer_forward.1} parent=55 // pred_region
          %s3087 = sand.u32 %s182, 1
          %s3088 = scalar_lea.sflag [#allocation4], %s3087
          %s3089 = sand.u32 %s182, 1
          %s3090 = scalar_lea.vmem [#allocation3], %s3089
          %3091 = dma.done %s3088, 16
        $region60: #{cnn_layer_forward.1} parent=55 // pred_fallthru
          _
      $region56: #{cnn_layer_forward.1} parent=5 // pred_fallthru
        _
    $region6: #{cnn_layer_forward.1} parent=1 // loop_footer
      %s20 = sadd.s32 1, %s16
    $region7: #{cnn_layer_forward.1} parent=1 // loop_footer_branch
      %15 = sbr.rel target = $region3
    $region8: #{cnn_layer_forward.1} parent=1 // loop_exit
      _
    %3092 = vsyncpa [#allocation4], 1
    %s3093 = scalar_lea.sflag [#allocation4], 1
    %3094 = vsyncpa %s3093, 1

</llo_original>
